<compile_context>
chip_gen: v7x
topology: tpu7x:2x2x1
jax: 0.10.0
libtpu: 0.0.40
codegen_flags: <defaults>
</compile_context>

<pallas_src>
import functools
import math

import jax
import jax.numpy as jnp
from jax.experimental import pallas as pl
from jax.experimental.pallas import tpu as pltpu


def _round_up(x, m):
    return (x + m - 1) // m * m


_FUSED_VMEM_BUDGET = 40 * 1024 * 1024   # use the fully fused kernel below this
_VMEM_CAP = 48 * 1024 * 1024            # safe scoped-VMEM cap on v5e/v6e/v7x


def _vmem_limit(est_bytes):
    return int(min(max(est_bytes + (4 << 20), 8 << 20), _VMEM_CAP))


# ----------------------------------------------------------------------------
# Path 1: fully fused Postnet — all layers of one batch element per grid step.
# ----------------------------------------------------------------------------
def _postnet_fused_kernel(*refs, n_layers, k_taps, pad, length,
                          c_ins, c_outs, tanh_flags):
    x_ref = refs[0]
    w_refs = refs[1:1 + n_layers]                      # (K, C_in_pad, C_out_pad) bf16
    ss_refs = refs[1 + n_layers:1 + 2 * n_layers]      # (2, C_out_pad) f32
    o_ref = refs[1 + 2 * n_layers]                     # (length, C_out_pad_last)
    buf_a = refs[1 + 2 * n_layers + 1]                 # (L_buf, C_max) bf16 scratch
    buf_b = refs[1 + 2 * n_layers + 2]

    # Zero both ping-pong activation buffers once per batch element so the
    # "same"-conv halo rows (and never-written rows/lanes) read as exact zeros.
    buf_a[...] = jnp.zeros_like(buf_a)
    buf_b[...] = jnp.zeros_like(buf_b)
    buf_a[pl.ds(pad, length), pl.ds(0, c_ins[0])] = x_ref[...]

    bufs = (buf_a, buf_b)
    for i in range(n_layers):
        src = bufs[i % 2]
        dst = bufs[(i + 1) % 2]
        cin, cout = c_ins[i], c_outs[i]
        w = w_refs[i]
        # K accumulated MXU matmuls as a value chain (no f32 scratch round trips).
        acc = jnp.dot(src[pl.ds(0, length), pl.ds(0, cin)], w[0],
                      preferred_element_type=jnp.float32)
        for k in range(1, k_taps):
            acc = acc + jnp.dot(src[pl.ds(k, length), pl.ds(0, cin)], w[k],
                                preferred_element_type=jnp.float32)
        # Conv bias + eval-mode BatchNorm folded into per-channel scale/shift.
        # Zero-padded scale/shift keep padded output lanes exactly 0.
        y = acc * ss_refs[i][0:1, :] + ss_refs[i][1:2, :]
        if tanh_flags[i]:
            y = jnp.tanh(y.astype(jnp.bfloat16))       # bf16 tanh (EUP on v6e/v7x)
        if i == n_layers - 1:
            o_ref[...] = y.astype(o_ref.dtype)
        else:
            dst[pl.ds(pad, length), pl.ds(0, cout)] = y.astype(jnp.bfloat16)


def _fused_vmem_estimate(length, layer_params, kernel_size):
    pad = (kernel_size - 1) // 2
    c_in0 = layer_params[0]['w_kio'].shape[1]
    c_last = layer_params[-1]['w_kio'].shape[2]
    c_max = max(max(lp['w_kio'].shape[1], lp['w_kio'].shape[2])
                for lp in layer_params)
    l_buf = _round_up(length + 2 * pad, 16)
    w_bytes = sum(math.prod(lp['w_kio'].shape) * 2 for lp in layer_params)
    ss_bytes = sum(math.prod(lp['scale_shift'].shape) * 4 for lp in layer_params)
    x_blk = length * c_in0 * 2
    o_blk = length * c_last * 4
    bufs = 2 * l_buf * c_max * 2
    live = 2 * length * c_max * 4          # f32 accumulator / epilogue live values
    return 2 * (w_bytes + ss_bytes + x_blk + o_blk) + bufs + live


def _postnet_fused_call(x, layer_params, *, kernel_size, vmem_est):
    n, length, n_mels = x.shape
    k = kernel_size
    assert k % 2 == 1, "kernel_size must be odd for 'same' padding"
    pad = (k - 1) // 2
    n_layers = len(layer_params)
    c_ins = tuple(lp['w_kio'].shape[1] for lp in layer_params)
    c_outs = tuple(lp['w_kio'].shape[2] for lp in layer_params)
    c_max = max(max(ci, co) for ci, co in zip(c_ins, c_outs))
    c_last = c_outs[-1]
    l_buf = _round_up(length + 2 * pad, 16)
    tanh_flags = tuple(i < n_layers - 1 for i in range(n_layers))

    # Single one-time glue op on the raw input (channel pad to a lane multiple
    # + bf16 cast). No per-layer pad/slice, no intermediate HBM activations.
    x_p = jnp.pad(x.astype(jnp.bfloat16),
                  ((0, 0), (0, 0), (0, c_ins[0] - n_mels)))

    kernel = functools.partial(
        _postnet_fused_kernel, n_layers=n_layers, k_taps=k, pad=pad,
        length=length, c_ins=c_ins, c_outs=c_outs, tanh_flags=tanh_flags)

    in_specs = [pl.BlockSpec((None, length, c_ins[0]), lambda b: (b, 0, 0))]
    # Weights / scale-shift use constant block indices -> fetched once and kept
    # resident in VMEM across the whole (batch-parallel) grid.
    in_specs += [pl.BlockSpec(lp['w_kio'].shape, lambda b: (0, 0, 0))
                 for lp in layer_params]
    in_specs += [pl.BlockSpec(lp['scale_shift'].shape, lambda b: (0, 0))
                 for lp in layer_params]

    out = pl.pallas_call(
        kernel,
        out_shape=jax.ShapeDtypeStruct((n, length, c_last), jnp.float32),
        grid_spec=pltpu.PrefetchScalarGridSpec(
            num_scalar_prefetch=0,
            grid=(n,),
            in_specs=in_specs,
            out_specs=pl.BlockSpec((None, length, c_last), lambda b: (b, 0, 0)),
            scratch_shapes=[pltpu.VMEM((l_buf, c_max), jnp.bfloat16),
                            pltpu.VMEM((l_buf, c_max), jnp.bfloat16)],
        ),
        compiler_params=pltpu.CompilerParams(
            dimension_semantics=("parallel",),
            vmem_limit_bytes=_vmem_limit(vmem_est)),
    )(x_p, *(lp['w_kio'] for lp in layer_params),
      *(lp['scale_shift'] for lp in layer_params))
    return out


# ----------------------------------------------------------------------------
# Path 2: per-layer tiled fallback (long sequences).
# ----------------------------------------------------------------------------
def _conv_bn_act_kernel(x_ref, w_ref, ss_ref, o_ref, *, tl, k_taps, apply_tanh,
                        length, mask_tail):
    # x_ref : (l_alloc + 2*pad, C_in_pad) bf16 — whole halo-padded row (batch elt)
    # w_ref : (K, C_in_pad, C_out_pad)    bf16
    # ss_ref: (2, C_out_pad)              f32 — row0 scale, row1 shift
    # o_ref : (tl, C_out_pad)
    l = pl.program_id(1)
    base = pl.multiple_of(l * tl, tl)

    acc = jnp.dot(x_ref[pl.ds(base, tl), :], w_ref[0],
                  preferred_element_type=jnp.float32)
    for k in range(1, k_taps):
        acc = acc + jnp.dot(x_ref[pl.ds(base + k, tl), :], w_ref[k],
                            preferred_element_type=jnp.float32)

    y = acc * ss_ref[0:1, :] + ss_ref[1:2, :]
    if mask_tail:
        # Keep rows past the true length exactly zero so the next layer needs
        # only a halo pad (no slice / tail re-pad between layers).
        rows = base + jax.lax.broadcasted_iota(jnp.int32, (tl, 1), 0)
        y = jnp.where(rows < length, y, 0.0)
    if apply_tanh:
        y = jnp.tanh(y.astype(jnp.bfloat16))
    o_ref[...] = y.astype(o_ref.dtype)


def conv1d_bn_act_pallas(x_nlc, w_kio, scale_shift, *, kernel_size, apply_tanh,
                         length, out_dtype, tl_default=512):
    n, l_in, c_in_pad = x_nlc.shape
    k = kernel_size
    pad = (k - 1) // 2
    c_out_pad = w_kio.shape[2]

    n_t = -(-length // tl_default)
    tl = min(_round_up(-(-length // n_t), 16), _round_up(length, 16))
    l_alloc = _round_up(length, tl)
    n_tiles = l_alloc // tl
    l_total = l_alloc + 2 * pad
    mask_tail = l_alloc != length

    # Per-layer glue is a single halo pad; the carried activation already has
    # l_alloc rows with an exactly-zero tail (maintained in-kernel).
    x_pad = jnp.pad(x_nlc, ((0, 0), (pad, pad + l_alloc - l_in), (0, 0)))

    kernel = functools.partial(_conv_bn_act_kernel, tl=tl, k_taps=k,
                               apply_tanh=apply_tanh, length=length,
                               mask_tail=mask_tail)

    est = (2 * l_total * c_in_pad * 2
           + 2 * k * c_in_pad * c_out_pad * 2
           + 2 * 2 * c_out_pad * 4
           + 2 * tl * c_out_pad * jnp.dtype(out_dtype).itemsize
           + 2 * tl * c_out_pad * 4)

    return pl.pallas_call(
        kernel,
        out_shape=jax.ShapeDtypeStruct((n, l_alloc, c_out_pad), out_dtype),
        grid_spec=pltpu.PrefetchScalarGridSpec(
            num_scalar_prefetch=0,
            grid=(n, n_tiles),
            in_specs=[
                # Whole halo-padded row of this batch element, resident across
                # the length-tile axis (block index independent of l).
                pl.BlockSpec((None, l_total, c_in_pad), lambda b, l: (b, 0, 0)),
                pl.BlockSpec((k, c_in_pad, c_out_pad), lambda b, l: (0, 0, 0)),
                pl.BlockSpec((2, c_out_pad), lambda b, l: (0, 0)),
            ],
            out_specs=pl.BlockSpec((None, tl, c_out_pad), lambda b, l: (b, l, 0)),
        ),
        compiler_params=pltpu.CompilerParams(
            dimension_semantics=("parallel", "parallel"),
            vmem_limit_bytes=_vmem_limit(est)),
    )(x_pad, w_kio, scale_shift)


def _postnet_per_layer(x, layer_params, *, kernel_size, length):
    n, t, n_mels = x.shape
    c_in0 = layer_params[0]['w_kio'].shape[1]
    # One-time channel pad + bf16 cast of the raw input.
    h = jnp.pad(x.astype(jnp.bfloat16), ((0, 0), (0, 0), (0, c_in0 - n_mels)))
    num = len(layer_params)
    for i, lp in enumerate(layer_params):
        assert h.shape[2] == lp['w_kio'].shape[1]
        is_last = i == num - 1
        h = conv1d_bn_act_pallas(
            h, lp['w_kio'], lp['scale_shift'], kernel_size=kernel_size,
            apply_tanh=not is_last, length=length,
            out_dtype=jnp.float32 if is_last else jnp.bfloat16)
    return h


# ----------------------------------------------------------------------------
# Full Postnet forward. x: (N, T, n_mels) -> (N, T, n_mels), matching the
# PyTorch module's transpose(1,2) -> convs -> transpose(1,2).
# ----------------------------------------------------------------------------
def postnet_pallas(x, layer_params, *, kernel_size, force_per_layer=False):
    n, t, n_mels = x.shape
    est = _fused_vmem_estimate(t, layer_params, kernel_size)
    if (not force_per_layer) and est <= _FUSED_VMEM_BUDGET:
        out = _postnet_fused_call(x, layer_params, kernel_size=kernel_size,
                                  vmem_est=est)
    else:
        out = _postnet_per_layer(x, layer_params, kernel_size=kernel_size,
                                 length=t)
    # Final (only) slice back to the true length / n_mels.
    return out[:, :t, :n_mels]


# ----------------------------------------------------------------------------
# Parameter construction (matches the PyTorch module's init scheme) and the
# re-layout / BN-folding into kernel-friendly arrays.
# ----------------------------------------------------------------------------
def init_postnet_params(key, n_mels, embed_dim, kernel_size, n_conv):
    in_sizes = [n_mels] + [embed_dim] * (n_conv - 1)
    out_sizes = [embed_dim] * (n_conv - 1) + [n_mels]
    gains = [5.0 / 3.0] * (n_conv - 1) + [1.0]   # calculate_gain('tanh'/'linear')
    params = []
    for cin, cout, gain in zip(in_sizes, out_sizes, gains):
        key, kw, kb, kg, kbt, km, kv = jax.random.split(key, 7)
        fan_in = cin * kernel_size
        fan_out = cout * kernel_size
        wlim = gain * math.sqrt(6.0 / (fan_in + fan_out))      # xavier_uniform_
        blim = 1.0 / math.sqrt(fan_in)                          # Conv1d bias init
        params.append(dict(
            weight=jax.random.uniform(kw, (cout, cin, kernel_size), jnp.float32,
                                      -wlim, wlim),
            bias=jax.random.uniform(kb, (cout,), jnp.float32, -blim, blim),
            gamma=jax.random.uniform(kg, (cout,), jnp.float32, 0.5, 1.5),
            beta=0.1 * jax.random.normal(kbt, (cout,), jnp.float32),
            mean=0.1 * jax.random.normal(km, (cout,), jnp.float32),
            var=jax.random.uniform(kv, (cout,), jnp.float32, 0.5, 1.5),
        ))
    return params


def prepare_layer(p, eps=1e-5, c_align=128):
    cout, cin, k = p['weight'].shape
    cin_pad = _round_up(cin, c_align)
    cout_pad = _round_up(cout, c_align)
    # (C_out, C_in, K) -> (K, C_in, C_out), zero-pad channels to lane multiples.
    w_kio = jnp.transpose(p['weight'], (2, 1, 0))
    w_kio = jnp.pad(w_kio, ((0, 0), (0, cin_pad - cin), (0, cout_pad - cout)))
    # Fold conv bias + eval-mode BatchNorm into per-channel scale/shift:
    #   y = conv(x)*scale + shift, scale = gamma/sqrt(var+eps),
    #   shift = (bias - mean)*scale + beta.
    scale = p['gamma'] / jnp.sqrt(p['var'] + eps)
    shift = (p['bias'] - p['mean']) * scale + p['beta']
    scale = jnp.pad(scale, (0, cout_pad - cout))   # zero pad -> padded lanes stay 0
    shift = jnp.pad(shift, (0, cout_pad - cout))
    ss = jnp.stack([scale, shift], axis=0).astype(jnp.float32)   # (2, C_out_pad)
    return dict(w_kio=w_kio.astype(jnp.bfloat16), scale_shift=ss)


# ----------------------------------------------------------------------------
# Pure-JAX reference with the same numerics (bf16 MXU inputs, f32 accumulation,
# eval-mode BN, bf16 tanh + bf16 intermediate activations).
# ----------------------------------------------------------------------------
def postnet_ref(x, params, *, kernel_size, eps=1e-5):
    pad = (kernel_size - 1) // 2
    h = x
    num = len(params)
    for i, p in enumerate(params):
        h_ncl = jnp.transpose(h, (0, 2, 1)).astype(jnp.bfloat16)
        y = jax.lax.conv_general_dilated(
            h_ncl, p['weight'].astype(jnp.bfloat16),
            window_strides=(1,), padding=[(pad, pad)],
            dimension_numbers=('NCH', 'OIH', 'NCH'),
            preferred_element_type=jnp.float32)
        scale = p['gamma'] / jnp.sqrt(p['var'] + eps)
        shift = (p['bias'] - p['mean']) * scale + p['beta']
        y = y * scale[None, :, None] + shift[None, :, None]
        if i < num - 1:
            y = jnp.tanh(y.astype(jnp.bfloat16))
        h = jnp.transpose(y, (0, 2, 1))
        # dropout: identity at inference
    return h.astype(jnp.float32)


if __name__ == "__main__":
    key = jax.random.PRNGKey(0)
    k_x, k_p = jax.random.split(key)

    # Small shapes consistent with the module:
    # Postnet(n_mels=8, postnet_embed_dim=32, postnet_kernel_size=5,
    #         postnet_n_conv=3, postnet_dropout=0.5); x: (batch=2, T=16, n_mels)
    batch, seq_len = 2, 16
    n_mels, embed_dim, kernel_size, n_conv = 8, 32, 5, 3

    x = jax.random.normal(k_x, (batch, seq_len, n_mels), jnp.float32)
    torch_like = init_postnet_params(k_p, n_mels, embed_dim, kernel_size, n_conv)
    layer_params = [prepare_layer(p) for p in torch_like]

    ref = postnet_ref(x, torch_like, kernel_size=kernel_size)

    # Fused single-kernel path (used at these shapes).
    fused_fn = jax.jit(functools.partial(postnet_pallas, kernel_size=kernel_size))
    out = jax.block_until_ready(fused_fn(x, layer_params))
    assert out.shape == (batch, seq_len, n_mels), out.shape
    assert jnp.allclose(out, ref, atol=1e-2, rtol=1e-2), \
        float(jnp.max(jnp.abs(out - ref)))

    # Per-layer tiled fallback path (used for very long sequences).
    tiled_fn = jax.jit(functools.partial(postnet_pallas, kernel_size=kernel_size,
                                         force_per_layer=True))
    out2 = jax.block_until_ready(tiled_fn(x, layer_params))
    assert out2.shape == (batch, seq_len, n_mels), out2.shape
    assert jnp.allclose(out2, ref, atol=1e-2, rtol=1e-2), \
        float(jnp.max(jnp.abs(out2 - ref)))

    print("KERNEL_OK")
</pallas_src>

<mosaic_0001>
module attributes {stable_mosaic.version = 11 : i64} {
  func.func @_postnet_fused_kernel(%arg0: i32, %arg1: memref<1x16x128xbf16, #tpu.memory_space<vmem>>, %arg2: memref<5x128x128xbf16, #tpu.memory_space<vmem>>, %arg3: memref<5x128x128xbf16, #tpu.memory_space<vmem>>, %arg4: memref<5x128x128xbf16, #tpu.memory_space<vmem>>, %arg5: memref<2x128xf32, #tpu.memory_space<vmem>>, %arg6: memref<2x128xf32, #tpu.memory_space<vmem>>, %arg7: memref<2x128xf32, #tpu.memory_space<vmem>>, %arg8: memref<1x16x128xf32, #tpu.memory_space<vmem>>, %arg9: memref<32x128xbf16, #tpu.memory_space<vmem>>, %arg10: memref<32x128xbf16, #tpu.memory_space<vmem>>) attributes {dimension_semantics = [#tpu.dimension_semantics<parallel>], iteration_bounds = array<i64: 2>, scalar_prefetch = 0 : i64, scratch_operands = 2 : i64, tpu.core_type = #tpu.core_type<tc>, window_params = [{transform_indices = @transform_0, window_bounds = array<i64: 1, 16, 128>}, {pipeline_mode = #tpu.pipeline_mode<synchronous>, transform_indices = @transform_1, window_bounds = array<i64: 5, 128, 128>}, {pipeline_mode = #tpu.pipeline_mode<synchronous>, transform_indices = @transform_2, window_bounds = array<i64: 5, 128, 128>}, {pipeline_mode = #tpu.pipeline_mode<synchronous>, transform_indices = @transform_3, window_bounds = array<i64: 5, 128, 128>}, {pipeline_mode = #tpu.pipeline_mode<synchronous>, transform_indices = @transform_4, window_bounds = array<i64: 2, 128>}, {pipeline_mode = #tpu.pipeline_mode<synchronous>, transform_indices = @transform_5, window_bounds = array<i64: 2, 128>}, {pipeline_mode = #tpu.pipeline_mode<synchronous>, transform_indices = @transform_6, window_bounds = array<i64: 2, 128>}, {transform_indices = @transform_7, window_bounds = array<i64: 1, 16, 128>}]} {
    %cst = arith.constant 0.000000e+00 : bf16
    %0 = vector.broadcast %cst : bf16 to vector<32x128xbf16>
    %c0 = arith.constant 0 : index
    %c0_0 = arith.constant 0 : index
    %1 = vector.load %arg9[%c0, %c0_0] : memref<32x128xbf16, #tpu.memory_space<vmem>>, vector<32x128xbf16>
    tpu.vector_store %arg9[%c0, %c0_0], %0 {strides = array<i32>} : memref<32x128xbf16, #tpu.memory_space<vmem>>, vector<32x128xbf16>,
    %cst_1 = arith.constant 0.000000e+00 : bf16
    %2 = vector.broadcast %cst_1 : bf16 to vector<32x128xbf16>
    %c0_2 = arith.constant 0 : index
    %c0_3 = arith.constant 0 : index
    %3 = vector.load %arg10[%c0_2, %c0_3] : memref<32x128xbf16, #tpu.memory_space<vmem>>, vector<32x128xbf16>
    tpu.vector_store %arg10[%c0_2, %c0_3], %2 {strides = array<i32>} : memref<32x128xbf16, #tpu.memory_space<vmem>>, vector<32x128xbf16>,
    %c0_4 = arith.constant 0 : index
    %c0_5 = arith.constant 0 : index
    %c0_6 = arith.constant 0 : index
    %4 = vector.load %arg1[%c0_4, %c0_5, %c0_6] : memref<1x16x128xbf16, #tpu.memory_space<vmem>>, vector<1x16x128xbf16>
    %5 = vector.shape_cast %4 : vector<1x16x128xbf16> to vector<16x128xbf16>
    %c2 = arith.constant 2 : index
    %c0_7 = arith.constant 0 : index
    %6 = vector.load %arg9[%c2, %c0_7] : memref<32x128xbf16, #tpu.memory_space<vmem>>, vector<16x128xbf16>
    tpu.vector_store %arg9[%c2, %c0_7], %5 {strides = array<i32>} : memref<32x128xbf16, #tpu.memory_space<vmem>>, vector<16x128xbf16>,
    %c0_8 = arith.constant 0 : index
    %c0_9 = arith.constant 0 : index
    %7 = vector.load %arg9[%c0_8, %c0_9] : memref<32x128xbf16, #tpu.memory_space<vmem>>, vector<16x128xbf16>
    %c0_10 = arith.constant 0 : index
    %c0_11 = arith.constant 0 : index
    %c0_12 = arith.constant 0 : index
    %8 = vector.load %arg2[%c0_10, %c0_11, %c0_12] : memref<5x128x128xbf16, #tpu.memory_space<vmem>>, vector<1x128x128xbf16>
    %9 = vector.shape_cast %8 : vector<1x128x128xbf16> to vector<128x128xbf16>
    %cst_13 = arith.constant dense<0.000000e+00> : vector<16x128xf32>
    %10 = tpu.matmul %7, %9, %cst_13 {dimension_numbers = #tpu.dot_dimension_numbers<[1], [0], [0], [1], [0, 0, 1, 1], [], []>} : vector<16x128xbf16>, vector<128x128xbf16>, vector<16x128xf32> -> vector<16x128xf32>
    %c1 = arith.constant 1 : index
    %c0_14 = arith.constant 0 : index
    %11 = vector.load %arg9[%c1, %c0_14] : memref<32x128xbf16, #tpu.memory_space<vmem>>, vector<16x128xbf16>
    %c1_15 = arith.constant 1 : index
    %c0_16 = arith.constant 0 : index
    %c0_17 = arith.constant 0 : index
    %12 = vector.load %arg2[%c1_15, %c0_16, %c0_17] : memref<5x128x128xbf16, #tpu.memory_space<vmem>>, vector<1x128x128xbf16>
    %13 = vector.shape_cast %12 : vector<1x128x128xbf16> to vector<128x128xbf16>
    %cst_18 = arith.constant dense<0.000000e+00> : vector<16x128xf32>
    %14 = tpu.matmul %11, %13, %cst_18 {dimension_numbers = #tpu.dot_dimension_numbers<[1], [0], [0], [1], [0, 0, 1, 1], [], []>} : vector<16x128xbf16>, vector<128x128xbf16>, vector<16x128xf32> -> vector<16x128xf32>
    %15 = arith.addf %10, %14 : vector<16x128xf32>
    %c2_19 = arith.constant 2 : index
    %c0_20 = arith.constant 0 : index
    %16 = vector.load %arg9[%c2_19, %c0_20] : memref<32x128xbf16, #tpu.memory_space<vmem>>, vector<16x128xbf16>
    %c2_21 = arith.constant 2 : index
    %c0_22 = arith.constant 0 : index
    %c0_23 = arith.constant 0 : index
    %17 = vector.load %arg2[%c2_21, %c0_22, %c0_23] : memref<5x128x128xbf16, #tpu.memory_space<vmem>>, vector<1x128x128xbf16>
    %18 = vector.shape_cast %17 : vector<1x128x128xbf16> to vector<128x128xbf16>
    %cst_24 = arith.constant dense<0.000000e+00> : vector<16x128xf32>
    %19 = tpu.matmul %16, %18, %cst_24 {dimension_numbers = #tpu.dot_dimension_numbers<[1], [0], [0], [1], [0, 0, 1, 1], [], []>} : vector<16x128xbf16>, vector<128x128xbf16>, vector<16x128xf32> -> vector<16x128xf32>
    %20 = arith.addf %15, %19 : vector<16x128xf32>
    %c3 = arith.constant 3 : index
    %c0_25 = arith.constant 0 : index
    %21 = vector.load %arg9[%c3, %c0_25] : memref<32x128xbf16, #tpu.memory_space<vmem>>, vector<16x128xbf16>
    %c3_26 = arith.constant 3 : index
    %c0_27 = arith.constant 0 : index
    %c0_28 = arith.constant 0 : index
    %22 = vector.load %arg2[%c3_26, %c0_27, %c0_28] : memref<5x128x128xbf16, #tpu.memory_space<vmem>>, vector<1x128x128xbf16>
    %23 = vector.shape_cast %22 : vector<1x128x128xbf16> to vector<128x128xbf16>
    %cst_29 = arith.constant dense<0.000000e+00> : vector<16x128xf32>
    %24 = tpu.matmul %21, %23, %cst_29 {dimension_numbers = #tpu.dot_dimension_numbers<[1], [0], [0], [1], [0, 0, 1, 1], [], []>} : vector<16x128xbf16>, vector<128x128xbf16>, vector<16x128xf32> -> vector<16x128xf32>
    %25 = arith.addf %20, %24 : vector<16x128xf32>
    %c4 = arith.constant 4 : index
    %c0_30 = arith.constant 0 : index
    %26 = vector.load %arg9[%c4, %c0_30] : memref<32x128xbf16, #tpu.memory_space<vmem>>, vector<16x128xbf16>
    %c4_31 = arith.constant 4 : index
    %c0_32 = arith.constant 0 : index
    %c0_33 = arith.constant 0 : index
    %27 = vector.load %arg2[%c4_31, %c0_32, %c0_33] : memref<5x128x128xbf16, #tpu.memory_space<vmem>>, vector<1x128x128xbf16>
    %28 = vector.shape_cast %27 : vector<1x128x128xbf16> to vector<128x128xbf16>
    %cst_34 = arith.constant dense<0.000000e+00> : vector<16x128xf32>
    %29 = tpu.matmul %26, %28, %cst_34 {dimension_numbers = #tpu.dot_dimension_numbers<[1], [0], [0], [1], [0, 0, 1, 1], [], []>} : vector<16x128xbf16>, vector<128x128xbf16>, vector<16x128xf32> -> vector<16x128xf32>
    %30 = arith.addf %25, %29 : vector<16x128xf32>
    %c0_35 = arith.constant 0 : index
    %c0_36 = arith.constant 0 : index
    %31 = vector.load %arg5[%c0_35, %c0_36] : memref<2x128xf32, #tpu.memory_space<vmem>>, vector<1x128xf32>
    %32 = vector.broadcast %31 : vector<1x128xf32> to vector<16x128xf32>
    %33 = arith.mulf %30, %32 : vector<16x128xf32>
    %c1_37 = arith.constant 1 : index
    %c0_38 = arith.constant 0 : index
    %34 = vector.load %arg5[%c1_37, %c0_38] : memref<2x128xf32, #tpu.memory_space<vmem>>, vector<1x128xf32>
    %35 = vector.broadcast %34 : vector<1x128xf32> to vector<16x128xf32>
    %36 = arith.addf %33, %35 : vector<16x128xf32>
    %37 = arith.truncf %36 : vector<16x128xf32> to vector<16x128xbf16>
    %38 = math.tanh %37 : vector<16x128xbf16>
    %c2_39 = arith.constant 2 : index
    %c0_40 = arith.constant 0 : index
    %39 = vector.load %arg10[%c2_39, %c0_40] : memref<32x128xbf16, #tpu.memory_space<vmem>>, vector<16x128xbf16>
    tpu.vector_store %arg10[%c2_39, %c0_40], %38 {strides = array<i32>} : memref<32x128xbf16, #tpu.memory_space<vmem>>, vector<16x128xbf16>,
    %c0_41 = arith.constant 0 : index
    %c0_42 = arith.constant 0 : index
    %40 = vector.load %arg10[%c0_41, %c0_42] : memref<32x128xbf16, #tpu.memory_space<vmem>>, vector<16x128xbf16>
    %c0_43 = arith.constant 0 : index
    %c0_44 = arith.constant 0 : index
    %c0_45 = arith.constant 0 : index
    %41 = vector.load %arg3[%c0_43, %c0_44, %c0_45] : memref<5x128x128xbf16, #tpu.memory_space<vmem>>, vector<1x128x128xbf16>
    %42 = vector.shape_cast %41 : vector<1x128x128xbf16> to vector<128x128xbf16>
    %cst_46 = arith.constant dense<0.000000e+00> : vector<16x128xf32>
    %43 = tpu.matmul %40, %42, %cst_46 {dimension_numbers = #tpu.dot_dimension_numbers<[1], [0], [0], [1], [0, 0, 1, 1], [], []>} : vector<16x128xbf16>, vector<128x128xbf16>, vector<16x128xf32> -> vector<16x128xf32>
    %c1_47 = arith.constant 1 : index
    %c0_48 = arith.constant 0 : index
    %44 = vector.load %arg10[%c1_47, %c0_48] : memref<32x128xbf16, #tpu.memory_space<vmem>>, vector<16x128xbf16>
    %c1_49 = arith.constant 1 : index
    %c0_50 = arith.constant 0 : index
    %c0_51 = arith.constant 0 : index
    %45 = vector.load %arg3[%c1_49, %c0_50, %c0_51] : memref<5x128x128xbf16, #tpu.memory_space<vmem>>, vector<1x128x128xbf16>
    %46 = vector.shape_cast %45 : vector<1x128x128xbf16> to vector<128x128xbf16>
    %cst_52 = arith.constant dense<0.000000e+00> : vector<16x128xf32>
    %47 = tpu.matmul %44, %46, %cst_52 {dimension_numbers = #tpu.dot_dimension_numbers<[1], [0], [0], [1], [0, 0, 1, 1], [], []>} : vector<16x128xbf16>, vector<128x128xbf16>, vector<16x128xf32> -> vector<16x128xf32>
    %48 = arith.addf %43, %47 : vector<16x128xf32>
    %c2_53 = arith.constant 2 : index
    %c0_54 = arith.constant 0 : index
    %49 = vector.load %arg10[%c2_53, %c0_54] : memref<32x128xbf16, #tpu.memory_space<vmem>>, vector<16x128xbf16>
    %c2_55 = arith.constant 2 : index
    %c0_56 = arith.constant 0 : index
    %c0_57 = arith.constant 0 : index
    %50 = vector.load %arg3[%c2_55, %c0_56, %c0_57] : memref<5x128x128xbf16, #tpu.memory_space<vmem>>, vector<1x128x128xbf16>
    %51 = vector.shape_cast %50 : vector<1x128x128xbf16> to vector<128x128xbf16>
    %cst_58 = arith.constant dense<0.000000e+00> : vector<16x128xf32>
    %52 = tpu.matmul %49, %51, %cst_58 {dimension_numbers = #tpu.dot_dimension_numbers<[1], [0], [0], [1], [0, 0, 1, 1], [], []>} : vector<16x128xbf16>, vector<128x128xbf16>, vector<16x128xf32> -> vector<16x128xf32>
    %53 = arith.addf %48, %52 : vector<16x128xf32>
    %c3_59 = arith.constant 3 : index
    %c0_60 = arith.constant 0 : index
    %54 = vector.load %arg10[%c3_59, %c0_60] : memref<32x128xbf16, #tpu.memory_space<vmem>>, vector<16x128xbf16>
    %c3_61 = arith.constant 3 : index
    %c0_62 = arith.constant 0 : index
    %c0_63 = arith.constant 0 : index
    %55 = vector.load %arg3[%c3_61, %c0_62, %c0_63] : memref<5x128x128xbf16, #tpu.memory_space<vmem>>, vector<1x128x128xbf16>
    %56 = vector.shape_cast %55 : vector<1x128x128xbf16> to vector<128x128xbf16>
    %cst_64 = arith.constant dense<0.000000e+00> : vector<16x128xf32>
    %57 = tpu.matmul %54, %56, %cst_64 {dimension_numbers = #tpu.dot_dimension_numbers<[1], [0], [0], [1], [0, 0, 1, 1], [], []>} : vector<16x128xbf16>, vector<128x128xbf16>, vector<16x128xf32> -> vector<16x128xf32>
    %58 = arith.addf %53, %57 : vector<16x128xf32>
    %c4_65 = arith.constant 4 : index
    %c0_66 = arith.constant 0 : index
    %59 = vector.load %arg10[%c4_65, %c0_66] : memref<32x128xbf16, #tpu.memory_space<vmem>>, vector<16x128xbf16>
    %c4_67 = arith.constant 4 : index
    %c0_68 = arith.constant 0 : index
    %c0_69 = arith.constant 0 : index
    %60 = vector.load %arg3[%c4_67, %c0_68, %c0_69] : memref<5x128x128xbf16, #tpu.memory_space<vmem>>, vector<1x128x128xbf16>
    %61 = vector.shape_cast %60 : vector<1x128x128xbf16> to vector<128x128xbf16>
    %cst_70 = arith.constant dense<0.000000e+00> : vector<16x128xf32>
    %62 = tpu.matmul %59, %61, %cst_70 {dimension_numbers = #tpu.dot_dimension_numbers<[1], [0], [0], [1], [0, 0, 1, 1], [], []>} : vector<16x128xbf16>, vector<128x128xbf16>, vector<16x128xf32> -> vector<16x128xf32>
    %63 = arith.addf %58, %62 : vector<16x128xf32>
    %c0_71 = arith.constant 0 : index
    %c0_72 = arith.constant 0 : index
    %64 = vector.load %arg6[%c0_71, %c0_72] : memref<2x128xf32, #tpu.memory_space<vmem>>, vector<1x128xf32>
    %65 = vector.broadcast %64 : vector<1x128xf32> to vector<16x128xf32>
    %66 = arith.mulf %63, %65 : vector<16x128xf32>
    %c1_73 = arith.constant 1 : index
    %c0_74 = arith.constant 0 : index
    %67 = vector.load %arg6[%c1_73, %c0_74] : memref<2x128xf32, #tpu.memory_space<vmem>>, vector<1x128xf32>
    %68 = vector.broadcast %67 : vector<1x128xf32> to vector<16x128xf32>
    %69 = arith.addf %66, %68 : vector<16x128xf32>
    %70 = arith.truncf %69 : vector<16x128xf32> to vector<16x128xbf16>
    %71 = math.tanh %70 : vector<16x128xbf16>
    %c2_75 = arith.constant 2 : index
    %c0_76 = arith.constant 0 : index
    %72 = vector.load %arg9[%c2_75, %c0_76] : memref<32x128xbf16, #tpu.memory_space<vmem>>, vector<16x128xbf16>
    tpu.vector_store %arg9[%c2_75, %c0_76], %71 {strides = array<i32>} : memref<32x128xbf16, #tpu.memory_space<vmem>>, vector<16x128xbf16>,
    %c0_77 = arith.constant 0 : index
    %c0_78 = arith.constant 0 : index
    %73 = vector.load %arg9[%c0_77, %c0_78] : memref<32x128xbf16, #tpu.memory_space<vmem>>, vector<16x128xbf16>
    %c0_79 = arith.constant 0 : index
    %c0_80 = arith.constant 0 : index
    %c0_81 = arith.constant 0 : index
    %74 = vector.load %arg4[%c0_79, %c0_80, %c0_81] : memref<5x128x128xbf16, #tpu.memory_space<vmem>>, vector<1x128x128xbf16>
    %75 = vector.shape_cast %74 : vector<1x128x128xbf16> to vector<128x128xbf16>
    %cst_82 = arith.constant dense<0.000000e+00> : vector<16x128xf32>
    %76 = tpu.matmul %73, %75, %cst_82 {dimension_numbers = #tpu.dot_dimension_numbers<[1], [0], [0], [1], [0, 0, 1, 1], [], []>} : vector<16x128xbf16>, vector<128x128xbf16>, vector<16x128xf32> -> vector<16x128xf32>
    %c1_83 = arith.constant 1 : index
    %c0_84 = arith.constant 0 : index
    %77 = vector.load %arg9[%c1_83, %c0_84] : memref<32x128xbf16, #tpu.memory_space<vmem>>, vector<16x128xbf16>
    %c1_85 = arith.constant 1 : index
    %c0_86 = arith.constant 0 : index
    %c0_87 = arith.constant 0 : index
    %78 = vector.load %arg4[%c1_85, %c0_86, %c0_87] : memref<5x128x128xbf16, #tpu.memory_space<vmem>>, vector<1x128x128xbf16>
    %79 = vector.shape_cast %78 : vector<1x128x128xbf16> to vector<128x128xbf16>
    %cst_88 = arith.constant dense<0.000000e+00> : vector<16x128xf32>
    %80 = tpu.matmul %77, %79, %cst_88 {dimension_numbers = #tpu.dot_dimension_numbers<[1], [0], [0], [1], [0, 0, 1, 1], [], []>} : vector<16x128xbf16>, vector<128x128xbf16>, vector<16x128xf32> -> vector<16x128xf32>
    %81 = arith.addf %76, %80 : vector<16x128xf32>
    %c2_89 = arith.constant 2 : index
    %c0_90 = arith.constant 0 : index
    %82 = vector.load %arg9[%c2_89, %c0_90] : memref<32x128xbf16, #tpu.memory_space<vmem>>, vector<16x128xbf16>
    %c2_91 = arith.constant 2 : index
    %c0_92 = arith.constant 0 : index
    %c0_93 = arith.constant 0 : index
    %83 = vector.load %arg4[%c2_91, %c0_92, %c0_93] : memref<5x128x128xbf16, #tpu.memory_space<vmem>>, vector<1x128x128xbf16>
    %84 = vector.shape_cast %83 : vector<1x128x128xbf16> to vector<128x128xbf16>
    %cst_94 = arith.constant dense<0.000000e+00> : vector<16x128xf32>
    %85 = tpu.matmul %82, %84, %cst_94 {dimension_numbers = #tpu.dot_dimension_numbers<[1], [0], [0], [1], [0, 0, 1, 1], [], []>} : vector<16x128xbf16>, vector<128x128xbf16>, vector<16x128xf32> -> vector<16x128xf32>
    %86 = arith.addf %81, %85 : vector<16x128xf32>
    %c3_95 = arith.constant 3 : index
    %c0_96 = arith.constant 0 : index
    %87 = vector.load %arg9[%c3_95, %c0_96] : memref<32x128xbf16, #tpu.memory_space<vmem>>, vector<16x128xbf16>
    %c3_97 = arith.constant 3 : index
    %c0_98 = arith.constant 0 : index
    %c0_99 = arith.constant 0 : index
    %88 = vector.load %arg4[%c3_97, %c0_98, %c0_99] : memref<5x128x128xbf16, #tpu.memory_space<vmem>>, vector<1x128x128xbf16>
    %89 = vector.shape_cast %88 : vector<1x128x128xbf16> to vector<128x128xbf16>
    %cst_100 = arith.constant dense<0.000000e+00> : vector<16x128xf32>
    %90 = tpu.matmul %87, %89, %cst_100 {dimension_numbers = #tpu.dot_dimension_numbers<[1], [0], [0], [1], [0, 0, 1, 1], [], []>} : vector<16x128xbf16>, vector<128x128xbf16>, vector<16x128xf32> -> vector<16x128xf32>
    %91 = arith.addf %86, %90 : vector<16x128xf32>
    %c4_101 = arith.constant 4 : index
    %c0_102 = arith.constant 0 : index
    %92 = vector.load %arg9[%c4_101, %c0_102] : memref<32x128xbf16, #tpu.memory_space<vmem>>, vector<16x128xbf16>
    %c4_103 = arith.constant 4 : index
    %c0_104 = arith.constant 0 : index
    %c0_105 = arith.constant 0 : index
    %93 = vector.load %arg4[%c4_103, %c0_104, %c0_105] : memref<5x128x128xbf16, #tpu.memory_space<vmem>>, vector<1x128x128xbf16>
    %94 = vector.shape_cast %93 : vector<1x128x128xbf16> to vector<128x128xbf16>
    %cst_106 = arith.constant dense<0.000000e+00> : vector<16x128xf32>
    %95 = tpu.matmul %92, %94, %cst_106 {dimension_numbers = #tpu.dot_dimension_numbers<[1], [0], [0], [1], [0, 0, 1, 1], [], []>} : vector<16x128xbf16>, vector<128x128xbf16>, vector<16x128xf32> -> vector<16x128xf32>
    %96 = arith.addf %91, %95 : vector<16x128xf32>
    %c0_107 = arith.constant 0 : index
    %c0_108 = arith.constant 0 : index
    %97 = vector.load %arg7[%c0_107, %c0_108] : memref<2x128xf32, #tpu.memory_space<vmem>>, vector<1x128xf32>
    %98 = vector.broadcast %97 : vector<1x128xf32> to vector<16x128xf32>
    %99 = arith.mulf %96, %98 : vector<16x128xf32>
    %c1_109 = arith.constant 1 : index
    %c0_110 = arith.constant 0 : index
    %100 = vector.load %arg7[%c1_109, %c0_110] : memref<2x128xf32, #tpu.memory_space<vmem>>, vector<1x128xf32>
    %101 = vector.broadcast %100 : vector<1x128xf32> to vector<16x128xf32>
    %102 = arith.addf %99, %101 : vector<16x128xf32>
    %c0_111 = arith.constant 0 : index
    %c0_112 = arith.constant 0 : index
    %c0_113 = arith.constant 0 : index
    %103 = vector.load %arg8[%c0_111, %c0_112, %c0_113] : memref<1x16x128xf32, #tpu.memory_space<vmem>>, vector<1x16x128xf32>
    %104 = vector.shape_cast %103 : vector<1x16x128xf32> to vector<16x128xf32>
    %105 = vector.shape_cast %102 : vector<16x128xf32> to vector<1x16x128xf32>
    tpu.vector_store %arg8[%c0_111, %c0_112, %c0_113], %105 {strides = array<i32>} : memref<1x16x128xf32, #tpu.memory_space<vmem>>, vector<1x16x128xf32>,
    return
  }
  func.func @transform_0(%arg0: i32) -> (i32, i32, i32) {
    %c0_i32 = arith.constant 0 : i32
    %c0_i32_0 = arith.constant 0 : i32
    %c0_i32_1 = arith.constant 0 : i32
    return %arg0, %c0_i32, %c0_i32_0 : i32, i32, i32
  }
  func.func @transform_1(%arg0: i32) -> (i32, i32, i32) {
    %c0_i32 = arith.constant 0 : i32
    %c0_i32_0 = arith.constant 0 : i32
    %c0_i32_1 = arith.constant 0 : i32
    %c0_i32_2 = arith.constant 0 : i32
    return %c0_i32, %c0_i32_0, %c0_i32_1 : i32, i32, i32
  }
  func.func @transform_2(%arg0: i32) -> (i32, i32, i32) {
    %c0_i32 = arith.constant 0 : i32
    %c0_i32_0 = arith.constant 0 : i32
    %c0_i32_1 = arith.constant 0 : i32
    %c0_i32_2 = arith.constant 0 : i32
    return %c0_i32, %c0_i32_0, %c0_i32_1 : i32, i32, i32
  }
  func.func @transform_3(%arg0: i32) -> (i32, i32, i32) {
    %c0_i32 = arith.constant 0 : i32
    %c0_i32_0 = arith.constant 0 : i32
    %c0_i32_1 = arith.constant 0 : i32
    %c0_i32_2 = arith.constant 0 : i32
    return %c0_i32, %c0_i32_0, %c0_i32_1 : i32, i32, i32
  }
  func.func @transform_4(%arg0: i32) -> (i32, i32) {
    %c0_i32 = arith.constant 0 : i32
    %c0_i32_0 = arith.constant 0 : i32
    %c0_i32_1 = arith.constant 0 : i32
    return %c0_i32, %c0_i32_0 : i32, i32
  }
  func.func @transform_5(%arg0: i32) -> (i32, i32) {
    %c0_i32 = arith.constant 0 : i32
    %c0_i32_0 = arith.constant 0 : i32
    %c0_i32_1 = arith.constant 0 : i32
    return %c0_i32, %c0_i32_0 : i32, i32
  }
  func.func @transform_6(%arg0: i32) -> (i32, i32) {
    %c0_i32 = arith.constant 0 : i32
    %c0_i32_0 = arith.constant 0 : i32
    %c0_i32_1 = arith.constant 0 : i32
    return %c0_i32, %c0_i32_0 : i32, i32
  }
  func.func @transform_7(%arg0: i32) -> (i32, i32, i32) {
    %c0_i32 = arith.constant 0 : i32
    %c0_i32_0 = arith.constant 0 : i32
    %c0_i32_1 = arith.constant 0 : i32
    return %arg0, %c0_i32, %c0_i32_0 : i32, i32, i32
  }
}

</mosaic_0001>

<llo_original>
// kernel: postnet_pallas.1
$region0: #{postnet_pallas.1}
  #allocation0 [shape = 'u32[]', space=smem, size = 0x4, offset = 0x4, fixed_abs, tag = 'smem constant byte address 0x4 - core index']
  #allocation1 [shape = 'u32[144,128]{1,0:T(1,128)}', space=vmem, size = 0x12000, scoped, tag = 'internal scratch']
  #allocation2 [shape = 'bf16[32,128]{1,0:T(16,128)(2,1)}', space=vmem, size = 0x2000, scoped, tag = 'scratch operand']
  #allocation3 [shape = 'bf16[32,128]{1,0:T(16,128)(2,1)}', space=vmem, size = 0x2000, scoped, tag = 'scratch operand']
  %s0 = inlined_call_operand.vmem [shape: bf16[2,16,128], index: 0, kind: input, shape index: {}]
  %s1 = inlined_call_operand.hbm [shape: bf16[5,128,128], index: 1, kind: input, shape index: {}]
  %s2 = inlined_call_operand.hbm [shape: bf16[5,128,128], index: 2, kind: input, shape index: {}]
  %s3 = inlined_call_operand.hbm [shape: bf16[5,128,128], index: 3, kind: input, shape index: {}]
  %s4 = inlined_call_operand.vmem [shape: f32[2,128], index: 4, kind: input, shape index: {}]
  %s5 = inlined_call_operand.vmem [shape: f32[2,128], index: 5, kind: input, shape index: {}]
  %s6 = inlined_call_operand.vmem [shape: f32[2,128], index: 6, kind: input, shape index: {}]
  %s7 = inlined_call_operand.vmem [shape: f32[2,16,128], index: 7, kind: output, shape index: {}]
  %s8 = sld [smem:[#allocation0]]
  $region73: #{postnet_pallas.1} parent=0
    _
  %s10 = ssub.s32 1, %s8
  %s11 = scalar_select 0, %s10, %s8
  $region1: #{postnet_pallas.1} parent=0
    #allocation4 [shape = 'u8[163840]{0}', space=vmem, size = 0x28000, scoped, tag = 'input window, operand 1, single buffered']
    #allocation5 [shape = 's32[2]{0}', space=sflag, size = 0x8, scoped, tag = 'scoped memory for postnet_pallas.1']
    #allocation6 [shape = 'u8[163840]{0}', space=vmem, size = 0x28000, scoped, tag = 'input window, operand 2, single buffered']
    #allocation7 [shape = 's32[1]{0}', space=sflag, size = 0x4, scoped, tag = 'scoped memory for postnet_pallas.1']
    #allocation8 [shape = 'u8[163840]{0}', space=vmem, size = 0x28000, scoped, tag = 'input window, operand 3, single buffered']
    %12 = vsyncpa [#allocation5], 0
    %13 = vsyncpa [#allocation7], 0
    loop: start=0, step=1, limit=4
    $region2: #{postnet_pallas.1} parent=1 // loop_pre_header
      _
    $region3: #{postnet_pallas.1} parent=1 // loop_header
      %s15 = sphi 0, %s19
      %p16 = scmp.ge.s32.totalorder %s15, 4
      %s25 = sphi 0, %s27
      %s28 = sphi 0, %s25
      %s29 = sphi 0, %s28
      %s45 = sphi 0, %s29
      %s49 = sphi 0, %s49
      %s51 = sphi 0, %s49
      %s52 = sphi 0, %s51
      %s66 = sphi 0, %s52
      %s70 = sphi 0, %s70
      %s72 = sphi 0, %s70
      %s73 = sphi 0, %s72
      %s87 = sphi 0, %s73
      %s91 = sphi 0, %s91
      %s93 = sphi 0, %s91
      %s94 = sphi 0, %s93
      %s108 = sphi 0, %s94
      %s112 = sphi 0, %s112
      %s114 = sphi 0, %s112
      %s115 = sphi 0, %s114
      %s129 = sphi 0, %s115
      %s133 = sphi 0, %s133
      %s135 = sphi 0, %s133
      %s136 = sphi 0, %s135
      %s150 = sphi 0, %s136
      %s154 = sphi 0, %s154
      %s156 = sphi 0, %s154
      %s157 = sphi 0, %s156
      %s171 = sphi 0, %s157
      %s177 = sphi 0, %s179
      %s180 = sphi 0, %s177
      %s181 = sphi 0, %s180
      %s197 = sphi 0, %s181
    $region4: #{postnet_pallas.1} parent=1 // loop_header_branch
      %18 = sbr.rel (%p16) target = $region8
    $region5: #{postnet_pallas.1} parent=1 // loop_body
      %s20 = ssub.s32 %s15, 1
      %s21 = ssub.s32 %s15, 2
      %s22 = sadd.s32 %s15, 1
      %s23 = ssub.s32 %s15, %s22
      %p24 = scmp.eq.s32.totalorder %s23, 0
      %s26 = sadd.s32 %s25, 1
      %s27 = scalar_select %p24, %s25, %s26
      %p30 = pneg %p24
      %p31 = scmp.eq.s32.totalorder %s15, 1
      %p32 = por %p30, %p31
      %p33 = scmp.ne.s32.totalorder %s25, %s28
      %p34 = scmp.eq.s32.totalorder %s15, 0
      %p35 = por %p33, %p34
      %p36 = scmp.ne.s32.totalorder %s25, %s28
      %p37 = scmp.eq.s32.totalorder %s20, 1
      %p38 = por %p36, %p37
      %p39 = scmp.ne.s32.totalorder %s28, %s29
      %p40 = scmp.eq.s32.totalorder %s20, 0
      %p41 = por %p39, %p40
      %p42 = scmp.ne.s32.totalorder %s28, %s29
      %p43 = scmp.eq.s32.totalorder %s21, 1
      %p44 = por %p42, %p43
      %p46 = scmp.ne.s32.totalorder %s29, %s45
      %p47 = scmp.eq.s32.totalorder %s21, 0
      %p48 = por %p46, %p47
      %s50 = sadd.s32 %s49, 1
      %p53 = scmp.eq.s32.totalorder %s15, 1
      %p54 = scmp.ne.s32.totalorder %s49, %s51
      %p55 = scmp.eq.s32.totalorder %s15, 0
      %p56 = por %p54, %p55
      %p57 = scmp.ne.s32.totalorder %s49, %s51
      %p58 = scmp.eq.s32.totalorder %s20, 1
      %p59 = por %p57, %p58
      %p60 = scmp.ne.s32.totalorder %s51, %s52
      %p61 = scmp.eq.s32.totalorder %s20, 0
      %p62 = por %p60, %p61
      %p63 = scmp.ne.s32.totalorder %s51, %s52
      %p64 = scmp.eq.s32.totalorder %s21, 1
      %p65 = por %p63, %p64
      %p67 = scmp.ne.s32.totalorder %s52, %s66
      %p68 = scmp.eq.s32.totalorder %s21, 0
      %p69 = por %p67, %p68
      %s71 = sadd.s32 %s70, 1
      %p74 = scmp.eq.s32.totalorder %s15, 1
      %p75 = scmp.ne.s32.totalorder %s70, %s72
      %p76 = scmp.eq.s32.totalorder %s15, 0
      %p77 = por %p75, %p76
      %p78 = scmp.ne.s32.totalorder %s70, %s72
      %p79 = scmp.eq.s32.totalorder %s20, 1
      %p80 = por %p78, %p79
      %p81 = scmp.ne.s32.totalorder %s72, %s73
      %p82 = scmp.eq.s32.totalorder %s20, 0
      %p83 = por %p81, %p82
      %p84 = scmp.ne.s32.totalorder %s72, %s73
      %p85 = scmp.eq.s32.totalorder %s21, 1
      %p86 = por %p84, %p85
      %p88 = scmp.ne.s32.totalorder %s73, %s87
      %p89 = scmp.eq.s32.totalorder %s21, 0
      %p90 = por %p88, %p89
      %s92 = sadd.s32 %s91, 1
      %p95 = scmp.eq.s32.totalorder %s15, 1
      %p96 = scmp.ne.s32.totalorder %s91, %s93
      %p97 = scmp.eq.s32.totalorder %s15, 0
      %p98 = por %p96, %p97
      %p99 = scmp.ne.s32.totalorder %s91, %s93
      %p100 = scmp.eq.s32.totalorder %s20, 1
      %p101 = por %p99, %p100
      %p102 = scmp.ne.s32.totalorder %s93, %s94
      %p103 = scmp.eq.s32.totalorder %s20, 0
      %p104 = por %p102, %p103
      %p105 = scmp.ne.s32.totalorder %s93, %s94
      %p106 = scmp.eq.s32.totalorder %s21, 1
      %p107 = por %p105, %p106
      %p109 = scmp.ne.s32.totalorder %s94, %s108
      %p110 = scmp.eq.s32.totalorder %s21, 0
      %p111 = por %p109, %p110
      %s113 = sadd.s32 %s112, 1
      %p116 = scmp.eq.s32.totalorder %s15, 1
      %p117 = scmp.ne.s32.totalorder %s112, %s114
      %p118 = scmp.eq.s32.totalorder %s15, 0
      %p119 = por %p117, %p118
      %p120 = scmp.ne.s32.totalorder %s112, %s114
      %p121 = scmp.eq.s32.totalorder %s20, 1
      %p122 = por %p120, %p121
      %p123 = scmp.ne.s32.totalorder %s114, %s115
      %p124 = scmp.eq.s32.totalorder %s20, 0
      %p125 = por %p123, %p124
      %p126 = scmp.ne.s32.totalorder %s114, %s115
      %p127 = scmp.eq.s32.totalorder %s21, 1
      %p128 = por %p126, %p127
      %p130 = scmp.ne.s32.totalorder %s115, %s129
      %p131 = scmp.eq.s32.totalorder %s21, 0
      %p132 = por %p130, %p131
      %s134 = sadd.s32 %s133, 1
      %p137 = scmp.eq.s32.totalorder %s15, 1
      %p138 = scmp.ne.s32.totalorder %s133, %s135
      %p139 = scmp.eq.s32.totalorder %s15, 0
      %p140 = por %p138, %p139
      %p141 = scmp.ne.s32.totalorder %s133, %s135
      %p142 = scmp.eq.s32.totalorder %s20, 1
      %p143 = por %p141, %p142
      %p144 = scmp.ne.s32.totalorder %s135, %s136
      %p145 = scmp.eq.s32.totalorder %s20, 0
      %p146 = por %p144, %p145
      %p147 = scmp.ne.s32.totalorder %s135, %s136
      %p148 = scmp.eq.s32.totalorder %s21, 1
      %p149 = por %p147, %p148
      %p151 = scmp.ne.s32.totalorder %s136, %s150
      %p152 = scmp.eq.s32.totalorder %s21, 0
      %p153 = por %p151, %p152
      %s155 = sadd.s32 %s154, 1
      %p158 = scmp.eq.s32.totalorder %s15, 1
      %p159 = scmp.ne.s32.totalorder %s154, %s156
      %p160 = scmp.eq.s32.totalorder %s15, 0
      %p161 = por %p159, %p160
      %p162 = scmp.ne.s32.totalorder %s154, %s156
      %p163 = scmp.eq.s32.totalorder %s20, 1
      %p164 = por %p162, %p163
      %p165 = scmp.ne.s32.totalorder %s156, %s157
      %p166 = scmp.eq.s32.totalorder %s20, 0
      %p167 = por %p165, %p166
      %p168 = scmp.ne.s32.totalorder %s156, %s157
      %p169 = scmp.eq.s32.totalorder %s21, 1
      %p170 = por %p168, %p169
      %p172 = scmp.ne.s32.totalorder %s157, %s171
      %p173 = scmp.eq.s32.totalorder %s21, 0
      %p174 = por %p172, %p173
      %s175 = ssub.s32 %s15, %s22
      %p176 = scmp.eq.s32.totalorder %s175, 0
      %s178 = sadd.s32 %s177, 1
      %s179 = scalar_select %p176, %s177, %s178
      %p182 = pneg %p176
      %p183 = scmp.eq.s32.totalorder %s15, 1
      %p184 = por %p182, %p183
      %p185 = scmp.ne.s32.totalorder %s177, %s180
      %p186 = scmp.eq.s32.totalorder %s15, 0
      %p187 = por %p185, %p186
      %p188 = scmp.ne.s32.totalorder %s177, %s180
      %p189 = scmp.eq.s32.totalorder %s20, 1
      %p190 = por %p188, %p189
      %p191 = scmp.ne.s32.totalorder %s180, %s181
      %p192 = scmp.eq.s32.totalorder %s20, 0
      %p193 = por %p191, %p192
      %p194 = scmp.ne.s32.totalorder %s180, %s181
      %p195 = scmp.eq.s32.totalorder %s21, 1
      %p196 = por %p194, %p195
      %p198 = scmp.ne.s32.totalorder %s181, %s197
      %p199 = scmp.eq.s32.totalorder %s21, 0
      %p200 = por %p198, %p199
      %p201 = scmp.le.s32.totalorder 1, %s15
      %p202 = scmp.lt.s32.totalorder %s15, 3
      %p203 = pnand %p201, %p202
      %p204 = pneg %p203
      // Predicated region
      $region9: #{postnet_pallas.1} parent=5 // pred_check
        _
      $region10: #{postnet_pallas.1} parent=5 // pred_check_branch
        %206 = sbr.rel (%p203) target = $region12
      $region11: #{postnet_pallas.1} parent=5 // pred_region
        %s207 = ssub.s32 %s15, 1
        // Predicated region
        $region13: #{postnet_pallas.1} parent=11 // pred_check
          %p208 = pneg %p62
        $region14: #{postnet_pallas.1} parent=11 // pred_check_branch
          %210 = sbr.rel (%p208) target = $region16
        $region15: #{postnet_pallas.1} parent=11 // pred_region
          %s212 = ssub.s32 5120, 5120
          %213 = vsyncadd [#allocation5], %s212
          %s214 = sshll.u32 [#allocation4], 4
          %s215 = int_to_ptr.vmem [resolvable:$true] %s214
          %220 = dma.hbm_to_vmem [thread:$0]  %s1, 5120, %s215, [#allocation5], 64, 64, 4
        $region16: #{postnet_pallas.1} parent=11 // pred_fallthru
          _
        // Predicated region
        $region17: #{postnet_pallas.1} parent=11 // pred_check
          %p221 = pneg %p83
        $region18: #{postnet_pallas.1} parent=11 // pred_check_branch
          %223 = sbr.rel (%p221) target = $region20
        $region19: #{postnet_pallas.1} parent=11 // pred_region
          %s225 = ssub.s32 5120, 5120
          %226 = vsyncadd [#allocation7], %s225
          %s227 = sshll.u32 [#allocation6], 4
          %s228 = int_to_ptr.vmem [resolvable:$true] %s227
          %233 = dma.hbm_to_vmem [thread:$0]  %s2, 5120, %s228, [#allocation7], 64, 64, 4
        $region20: #{postnet_pallas.1} parent=11 // pred_fallthru
          _
        // Predicated region
        $region21: #{postnet_pallas.1} parent=11 // pred_check
          %p234 = pneg %p104
        $region22: #{postnet_pallas.1} parent=11 // pred_check_branch
          %236 = sbr.rel (%p234) target = $region24
        $region23: #{postnet_pallas.1} parent=11 // pred_region
          %s238 = ssub.s32 5120, 5120
          %239 = vsyncadd [#allocation7], %s238
          %s240 = sshll.u32 [#allocation8], 4
          %s241 = int_to_ptr.vmem [resolvable:$true] %s240
          %246 = dma.hbm_to_vmem [thread:$0]  %s3, 5120, %s241, [#allocation7], 64, 64, 4
        $region24: #{postnet_pallas.1} parent=11 // pred_fallthru
          _
        // Predicated region
        $region25: #{postnet_pallas.1} parent=11 // pred_check
          %p247 = pneg %p125
        $region26: #{postnet_pallas.1} parent=11 // pred_check_branch
          %249 = sbr.rel (%p247) target = $region28
        $region27: #{postnet_pallas.1} parent=11 // pred_region
          _
        $region28: #{postnet_pallas.1} parent=11 // pred_fallthru
          _
        // Predicated region
        $region29: #{postnet_pallas.1} parent=11 // pred_check
          %p250 = pneg %p146
        $region30: #{postnet_pallas.1} parent=11 // pred_check_branch
          %252 = sbr.rel (%p250) target = $region32
        $region31: #{postnet_pallas.1} parent=11 // pred_region
          _
        $region32: #{postnet_pallas.1} parent=11 // pred_fallthru
          _
        // Predicated region
        $region33: #{postnet_pallas.1} parent=11 // pred_check
          %p253 = pneg %p167
        $region34: #{postnet_pallas.1} parent=11 // pred_check_branch
          %255 = sbr.rel (%p253) target = $region36
        $region35: #{postnet_pallas.1} parent=11 // pred_region
          _
        $region36: #{postnet_pallas.1} parent=11 // pred_fallthru
          _
      $region12: #{postnet_pallas.1} parent=5 // pred_fallthru
        _
      %p256 = scmp.lt.s32.totalorder %s15, 2
      // Predicated region
      $region37: #{postnet_pallas.1} parent=5 // pred_check
        %p257 = pneg %p256
      $region38: #{postnet_pallas.1} parent=5 // pred_check_branch
        %259 = sbr.rel (%p257) target = $region40
      $region39: #{postnet_pallas.1} parent=5 // pred_region
        // Predicated region
        $region41: #{postnet_pallas.1} parent=39 // pred_check
          %p260 = pneg %p35
        $region42: #{postnet_pallas.1} parent=39 // pred_check_branch
          %262 = sbr.rel (%p260) target = $region44
        $region43: #{postnet_pallas.1} parent=39 // pred_region
          %p263 = scmp.lt.s32.totalorder %s15, 1
          %s264 = scalar_select %p263, %s15, 1
          %s265 = smul.addr %s264, 2
          %s266 = smul.addr %s265, 4
          %s267 = scalar_lea.vmem %s0, %s266
        $region44: #{postnet_pallas.1} parent=39 // pred_fallthru
          _
      $region40: #{postnet_pallas.1} parent=5 // pred_fallthru
        _
      %p268 = scmp.le.s32.totalorder 1, %s15
      %p269 = scmp.lt.s32.totalorder %s15, 3
      %p270 = pnand %p268, %p269
      %p271 = pneg %p270
      // Predicated region
      $region45: #{postnet_pallas.1} parent=5 // pred_check
        _
      $region46: #{postnet_pallas.1} parent=5 // pred_check_branch
        %273 = sbr.rel (%p270) target = $region48
      $region47: #{postnet_pallas.1} parent=5 // pred_region
        %s274 = ssub.s32 %s15, 1
        // Predicated region
        $region49: #{postnet_pallas.1} parent=47 // pred_check
          %p275 = pneg %p62
        $region50: #{postnet_pallas.1} parent=47 // pred_check_branch
          %277 = sbr.rel (%p275) target = $region52
        $region51: #{postnet_pallas.1} parent=47 // pred_region
          %278 = dma.done [#allocation5], 5120
        $region52: #{postnet_pallas.1} parent=47 // pred_fallthru
          _
        // Predicated region
        $region53: #{postnet_pallas.1} parent=47 // pred_check
          %p279 = pneg %p83
        $region54: #{postnet_pallas.1} parent=47 // pred_check_branch
          %281 = sbr.rel (%p279) target = $region56
        $region55: #{postnet_pallas.1} parent=47 // pred_region
          %282 = dma.done [#allocation7], 5120
        $region56: #{postnet_pallas.1} parent=47 // pred_fallthru
          _
        // Predicated region
        $region57: #{postnet_pallas.1} parent=47 // pred_check
          %p283 = pneg %p104
        $region58: #{postnet_pallas.1} parent=47 // pred_check_branch
          %285 = sbr.rel (%p283) target = $region60
        $region59: #{postnet_pallas.1} parent=47 // pred_region
          %286 = dma.done [#allocation7], 5120
        $region60: #{postnet_pallas.1} parent=47 // pred_fallthru
          _
        %p287 = scmp.lt.s32.totalorder %s20, 1
        %s288 = scalar_select %p287, %s20, 1
        %s289 = smul.addr %s288, 2
        %s290 = smul.addr %s289, 4
        %s291 = scalar_lea.vmem %s0, %s290
        %p292 = pneg %p41
        %p293 = pneg %p38
        %p294 = pneg %p62
        %p295 = pneg %p59
        %p296 = pneg %p83
        %p297 = pneg %p80
        %p298 = pneg %p104
        %p299 = pneg %p101
        %p300 = pneg %p125
        %p301 = pneg %p122
        %p302 = pneg %p146
        %p303 = pneg %p143
        %p304 = pneg %p167
        %p305 = pneg %p164
        %p306 = pneg %p193
        %p307 = pneg %p190
        %p308 = scmp.lt.s32.totalorder %s20, 1
        %s309 = scalar_select %p308, %s20, 1
        %s310 = smul.addr %s309, 2
        %s311 = smul.addr %s310, 8
        %s312 = scalar_lea.vmem %s7, %s311
        %p313 = scmp.lt.s32.totalorder %s20, 1
        %s314 = scalar_select %p313, %s20, 1
        %s315 = smul.addr %s314, 2
        %s316 = smul.addr %s315, 4
        %s317 = scalar_lea.vmem %s0, %s316
        %p318 = scmp.lt.s32.totalorder %s20, 1
        %s319 = scalar_select %p318, %s20, 1
        %s320 = smul.addr %s319, 2
        %s321 = smul.addr %s320, 8
        %s322 = scalar_lea.vmem %s7, %s321
        %324 = vst [vmem:[#allocation2] sm:$0xff] 0
        %325 = vst [vmem:[#allocation2 + $0x8] sm:$0xff] 0
        %326 = vst [vmem:[#allocation3] sm:$0xff] 0
        %327 = vst [vmem:[#allocation3 + $0x8] sm:$0xff] 0
        %v328 = vld [vmem:[%s317] sm:$0xf]
        %v329 = vld [vmem:[%s317 + $0x4] sm:$0xf]
        %v332 = vunpack.c.l.b16 %v328
        %v333 = vunpack.c.l.b16 %v329
        %v334 = vpack.c.b16 %v333, %v332
        %v335 = vrot.slane %v334, 7
        %337 = vst [vmem:[#allocation2] sm:$0xfe] %v335
        %338 = vst [vmem:[#allocation2 + $0x8] sm:$0x1] %v335
        %v339 = vld [vmem:[#allocation2] sm:$0xff]
        %v340 = vld [vmem:[#allocation4] sm:$0xf]
        %v341 = vld [vmem:[#allocation4 + $0x4] sm:$0xf]
        %v342 = vld [vmem:[#allocation4 + $0x8] sm:$0xf]
        %v343 = vld [vmem:[#allocation4 + $0xc] sm:$0xf]
        %v344 = vld [vmem:[#allocation4 + $0x10] sm:$0xf]
        %v345 = vld [vmem:[#allocation4 + $0x14] sm:$0xf]
        %v346 = vld [vmem:[#allocation4 + $0x18] sm:$0xf]
        %v347 = vld [vmem:[#allocation4 + $0x1c] sm:$0xf]
        %v348 = vld [vmem:[#allocation4 + $0x20] sm:$0xf]
        %v349 = vld [vmem:[#allocation4 + $0x24] sm:$0xf]
        %v350 = vld [vmem:[#allocation4 + $0x28] sm:$0xf]
        %v351 = vld [vmem:[#allocation4 + $0x2c] sm:$0xf]
        %v352 = vld [vmem:[#allocation4 + $0x30] sm:$0xf]
        %v353 = vld [vmem:[#allocation4 + $0x34] sm:$0xf]
        %v354 = vld [vmem:[#allocation4 + $0x38] sm:$0xf]
        %v355 = vld [vmem:[#allocation4 + $0x3c] sm:$0xf]
        %v356 = vld [vmem:[#allocation2] sm:$0xff]
        %v357 = vld [vmem:[#allocation2 + $0x8] sm:$0x1]
        %s358 = scalar_lea.vmem [#allocation4], 64
        %v359 = vld [vmem:[%s358] sm:$0xf]
        %v360 = vld [vmem:[%s358 + $0x4] sm:$0xf]
        %v361 = vld [vmem:[%s358 + $0x8] sm:$0xf]
        %v362 = vld [vmem:[%s358 + $0xc] sm:$0xf]
        %v363 = vld [vmem:[%s358 + $0x10] sm:$0xf]
        %v364 = vld [vmem:[%s358 + $0x14] sm:$0xf]
        %v365 = vld [vmem:[%s358 + $0x18] sm:$0xf]
        %v366 = vld [vmem:[%s358 + $0x1c] sm:$0xf]
        %v367 = vld [vmem:[%s358 + $0x20] sm:$0xf]
        %v368 = vld [vmem:[%s358 + $0x24] sm:$0xf]
        %v369 = vld [vmem:[%s358 + $0x28] sm:$0xf]
        %v370 = vld [vmem:[%s358 + $0x2c] sm:$0xf]
        %v371 = vld [vmem:[%s358 + $0x30] sm:$0xf]
        %v372 = vld [vmem:[%s358 + $0x34] sm:$0xf]
        %v373 = vld [vmem:[%s358 + $0x38] sm:$0xf]
        %v374 = vld [vmem:[%s358 + $0x3c] sm:$0xf]
        %vm375 = vsmask.f32 7424
        %v377 = vshrl.u32 %v356, 16
        %v379 = vshll.u32 %v356, 16
        %v381 = vrot.slane %v379, 1
        %v382 = vor.u32 %v377, %v381
        %v384 = vshll.u32 %v357, 16
        %v386 = vrot.slane %v384, 1
        %v387 = vsel %vm375, %v382, %v386
        %v405 = vunpack.c.l.b16 %v359
        %v406 = vunpack.c.l.b16 %v360
        %v407 = vunpack.c.l.b16 %v361
        %v408 = vunpack.c.l.b16 %v362
        %v409 = vunpack.c.l.b16 %v363
        %v410 = vunpack.c.l.b16 %v364
        %v411 = vunpack.c.l.b16 %v365
        %v412 = vunpack.c.l.b16 %v366
        %v413 = vunpack.c.l.b16 %v367
        %v414 = vunpack.c.l.b16 %v368
        %v415 = vunpack.c.l.b16 %v369
        %v416 = vunpack.c.l.b16 %v370
        %v417 = vunpack.c.l.b16 %v371
        %v418 = vunpack.c.l.b16 %v372
        %v419 = vunpack.c.l.b16 %v373
        %v420 = vunpack.c.l.b16 %v374
        %v421 = vpack.c.b16 %v406, %v405
        %v422 = vpack.c.b16 %v408, %v407
        %v423 = vpack.c.b16 %v410, %v409
        %v424 = vpack.c.b16 %v412, %v411
        %v425 = vpack.c.b16 %v414, %v413
        %v426 = vpack.c.b16 %v416, %v415
        %v427 = vpack.c.b16 %v418, %v417
        %v428 = vpack.c.b16 %v420, %v419
        %437 = vmatprep.subr.bf16.mxu0 0
        %438 = vmatpush1.bf16.msra.mxu0 %v421
        %439 = vmatprep.subr.bf16.mxu0 0
        %440 = vmatpush1.bf16.msra.mxu0 %v422
        %441 = vmatprep.subr.bf16.mxu0 0
        %442 = vmatpush1.bf16.msra.mxu0 %v423
        %443 = vmatprep.subr.bf16.mxu0 0
        %444 = vmatpush1.bf16.msra.mxu0 %v424
        %445 = vmatprep.subr.bf16.mxu0 0
        %446 = vmatpush1.bf16.msra.mxu0 %v425
        %447 = vmatprep.subr.bf16.mxu0 0
        %448 = vmatpush1.bf16.msra.mxu0 %v426
        %449 = vmatprep.subr.bf16.mxu0 0
        %450 = vmatpush1.bf16.msra.mxu0 %v427
        %451 = vmatprep.subr.bf16.mxu0 0
        %452 = vmatpush1.bf16.msra.mxu0 %v428
        %453 = vmatprep.subr.bf16.mxu0 0
        %454 = vmatpush1.bf16.msra.mxu0 0
        %455 = vmatprep.subr.bf16.mxu0 0
        %456 = vmatpush1.bf16.msra.mxu0 0
        %457 = vmatprep.subr.bf16.mxu0 0
        %458 = vmatpush1.bf16.msra.mxu0 0
        %459 = vmatprep.subr.bf16.mxu0 0
        %460 = vmatpush1.bf16.msra.mxu0 0
        %461 = vmatprep.subr.bf16.mxu0 0
        %462 = vmatpush1.bf16.msra.mxu0 0
        %463 = vmatprep.subr.bf16.mxu0 0
        %464 = vmatpush1.bf16.msra.mxu0 0
        %465 = vmatprep.subr.bf16.mxu0 0
        %466 = vmatpush1.bf16.msra.mxu0 0
        %467 = vmatprep.subr.bf16.mxu0 0
        %468 = vmatpush1.bf16.msra.mxu0 0
        %469 = vmatprep.mubr.bf16.mxu0 0
        %470 = vmatmul.mubr.bf16.gmra.mrb[0].mxu0 %v387
        %v471 = vpop.f32.mrb[0].mxu0
        %v472 = vadd.f32 0.0, %v471
        %v473 = vpop.f32.mrb[0].mxu0
        %v474 = vpop.f32.mrb[0].mxu0
        %v475 = vadd.f32 0.0, %v474
        %v476 = vpop.f32.mrb[0].mxu0
        %477 = vdwg.mxu0
        %v494 = vunpack.c.l.b16 %v340
        %v495 = vunpack.c.l.b16 %v341
        %v496 = vunpack.c.l.b16 %v342
        %v497 = vunpack.c.l.b16 %v343
        %v498 = vunpack.c.l.b16 %v344
        %v499 = vunpack.c.l.b16 %v345
        %v500 = vunpack.c.l.b16 %v346
        %v501 = vunpack.c.l.b16 %v347
        %v502 = vunpack.c.l.b16 %v348
        %v503 = vunpack.c.l.b16 %v349
        %v504 = vunpack.c.l.b16 %v350
        %v505 = vunpack.c.l.b16 %v351
        %v506 = vunpack.c.l.b16 %v352
        %v507 = vunpack.c.l.b16 %v353
        %v508 = vunpack.c.l.b16 %v354
        %v509 = vunpack.c.l.b16 %v355
        %v510 = vpack.c.b16 %v495, %v494
        %v511 = vpack.c.b16 %v497, %v496
        %v512 = vpack.c.b16 %v499, %v498
        %v513 = vpack.c.b16 %v501, %v500
        %v514 = vpack.c.b16 %v503, %v502
        %v515 = vpack.c.b16 %v505, %v504
        %v516 = vpack.c.b16 %v507, %v506
        %v517 = vpack.c.b16 %v509, %v508
        %526 = vmatprep.subr.bf16.mxu0 0
        %527 = vmatpush1.bf16.msra.mxu0 %v510
        %528 = vmatprep.subr.bf16.mxu0 0
        %529 = vmatpush1.bf16.msra.mxu0 %v511
        %530 = vmatprep.subr.bf16.mxu0 0
        %531 = vmatpush1.bf16.msra.mxu0 %v512
        %532 = vmatprep.subr.bf16.mxu0 0
        %533 = vmatpush1.bf16.msra.mxu0 %v513
        %534 = vmatprep.subr.bf16.mxu0 0
        %535 = vmatpush1.bf16.msra.mxu0 %v514
        %536 = vmatprep.subr.bf16.mxu0 0
        %537 = vmatpush1.bf16.msra.mxu0 %v515
        %538 = vmatprep.subr.bf16.mxu0 0
        %539 = vmatpush1.bf16.msra.mxu0 %v516
        %540 = vmatprep.subr.bf16.mxu0 0
        %541 = vmatpush1.bf16.msra.mxu0 %v517
        %542 = vmatprep.subr.bf16.mxu0 0
        %543 = vmatpush1.bf16.msra.mxu0 0
        %544 = vmatprep.subr.bf16.mxu0 0
        %545 = vmatpush1.bf16.msra.mxu0 0
        %546 = vmatprep.subr.bf16.mxu0 0
        %547 = vmatpush1.bf16.msra.mxu0 0
        %548 = vmatprep.subr.bf16.mxu0 0
        %549 = vmatpush1.bf16.msra.mxu0 0
        %550 = vmatprep.subr.bf16.mxu0 0
        %551 = vmatpush1.bf16.msra.mxu0 0
        %552 = vmatprep.subr.bf16.mxu0 0
        %553 = vmatpush1.bf16.msra.mxu0 0
        %554 = vmatprep.subr.bf16.mxu0 0
        %555 = vmatpush1.bf16.msra.mxu0 0
        %556 = vmatprep.subr.bf16.mxu0 0
        %557 = vmatpush1.bf16.msra.mxu0 0
        %558 = vmatprep.mubr.bf16.mxu0 0
        %559 = vmatmul.mubr.bf16.gmra.mrb[0].mxu0 %v339
        %v560 = vpop.f32.mrb[0].mxu0
        %v561 = vadd.f32 %v472, %v560
        %v562 = vpop.f32.mrb[0].mxu0
        %v563 = vpop.f32.mrb[0].mxu0
        %v564 = vadd.f32 %v475, %v563
        %v565 = vpop.f32.mrb[0].mxu0
        %566 = vdwg.mxu0
        %v567 = vld [vmem:[#allocation2] sm:$0xfe]
        %s568 = scalar_lea.vmem [#allocation4], 128
        %v569 = vld [vmem:[%s568] sm:$0xf]
        %v570 = vld [vmem:[%s568 + $0x4] sm:$0xf]
        %v571 = vld [vmem:[%s568 + $0x8] sm:$0xf]
        %v572 = vld [vmem:[%s568 + $0xc] sm:$0xf]
        %v573 = vld [vmem:[%s568 + $0x10] sm:$0xf]
        %v574 = vld [vmem:[%s568 + $0x14] sm:$0xf]
        %v575 = vld [vmem:[%s568 + $0x18] sm:$0xf]
        %v576 = vld [vmem:[%s568 + $0x1c] sm:$0xf]
        %v577 = vld [vmem:[%s568 + $0x20] sm:$0xf]
        %v578 = vld [vmem:[%s568 + $0x24] sm:$0xf]
        %v579 = vld [vmem:[%s568 + $0x28] sm:$0xf]
        %v580 = vld [vmem:[%s568 + $0x2c] sm:$0xf]
        %v581 = vld [vmem:[%s568 + $0x30] sm:$0xf]
        %v582 = vld [vmem:[%s568 + $0x34] sm:$0xf]
        %v583 = vld [vmem:[%s568 + $0x38] sm:$0xf]
        %v584 = vld [vmem:[%s568 + $0x3c] sm:$0xf]
        %vm587 = vcmask 1046528
        %v588 = vrot.slane %v567, 1
        %v589 = vrot.slane %v357, 1
        %v590 = vsel %vm587, %v588, %v589
        %v608 = vunpack.c.l.b16 %v569
        %v609 = vunpack.c.l.b16 %v570
        %v610 = vunpack.c.l.b16 %v571
        %v611 = vunpack.c.l.b16 %v572
        %v612 = vunpack.c.l.b16 %v573
        %v613 = vunpack.c.l.b16 %v574
        %v614 = vunpack.c.l.b16 %v575
        %v615 = vunpack.c.l.b16 %v576
        %v616 = vunpack.c.l.b16 %v577
        %v617 = vunpack.c.l.b16 %v578
        %v618 = vunpack.c.l.b16 %v579
        %v619 = vunpack.c.l.b16 %v580
        %v620 = vunpack.c.l.b16 %v581
        %v621 = vunpack.c.l.b16 %v582
        %v622 = vunpack.c.l.b16 %v583
        %v623 = vunpack.c.l.b16 %v584
        %v624 = vpack.c.b16 %v609, %v608
        %v625 = vpack.c.b16 %v611, %v610
        %v626 = vpack.c.b16 %v613, %v612
        %v627 = vpack.c.b16 %v615, %v614
        %v628 = vpack.c.b16 %v617, %v616
        %v629 = vpack.c.b16 %v619, %v618
        %v630 = vpack.c.b16 %v621, %v620
        %v631 = vpack.c.b16 %v623, %v622
        %640 = vmatprep.subr.bf16.mxu0 0
        %641 = vmatpush1.bf16.msra.mxu0 %v624
        %642 = vmatprep.subr.bf16.mxu0 0
        %643 = vmatpush1.bf16.msra.mxu0 %v625
        %644 = vmatprep.subr.bf16.mxu0 0
        %645 = vmatpush1.bf16.msra.mxu0 %v626
        %646 = vmatprep.subr.bf16.mxu0 0
        %647 = vmatpush1.bf16.msra.mxu0 %v627
        %648 = vmatprep.subr.bf16.mxu0 0
        %649 = vmatpush1.bf16.msra.mxu0 %v628
        %650 = vmatprep.subr.bf16.mxu0 0
        %651 = vmatpush1.bf16.msra.mxu0 %v629
        %652 = vmatprep.subr.bf16.mxu0 0
        %653 = vmatpush1.bf16.msra.mxu0 %v630
        %654 = vmatprep.subr.bf16.mxu0 0
        %655 = vmatpush1.bf16.msra.mxu0 %v631
        %656 = vmatprep.subr.bf16.mxu0 0
        %657 = vmatpush1.bf16.msra.mxu0 0
        %658 = vmatprep.subr.bf16.mxu0 0
        %659 = vmatpush1.bf16.msra.mxu0 0
        %660 = vmatprep.subr.bf16.mxu0 0
        %661 = vmatpush1.bf16.msra.mxu0 0
        %662 = vmatprep.subr.bf16.mxu0 0
        %663 = vmatpush1.bf16.msra.mxu0 0
        %664 = vmatprep.subr.bf16.mxu0 0
        %665 = vmatpush1.bf16.msra.mxu0 0
        %666 = vmatprep.subr.bf16.mxu0 0
        %667 = vmatpush1.bf16.msra.mxu0 0
        %668 = vmatprep.subr.bf16.mxu0 0
        %669 = vmatpush1.bf16.msra.mxu0 0
        %670 = vmatprep.subr.bf16.mxu0 0
        %671 = vmatpush1.bf16.msra.mxu0 0
        %672 = vmatprep.mubr.bf16.mxu0 0
        %673 = vmatmul.mubr.bf16.gmra.mrb[0].mxu0 %v590
        %v674 = vpop.f32.mrb[0].mxu0
        %v675 = vadd.f32 0.0, %v674
        %v676 = vpop.f32.mrb[0].mxu0
        %v677 = vpop.f32.mrb[0].mxu0
        %v678 = vadd.f32 0.0, %v677
        %v679 = vpop.f32.mrb[0].mxu0
        %680 = vdwg.mxu0
        %v681 = vadd.f32 %v561, %v675
        %v682 = vadd.f32 %v564, %v678
        %v683 = vld [vmem:[#allocation2 + $0x8] sm:$0x3]
        %s684 = scalar_lea.vmem [#allocation4], 192
        %v685 = vld [vmem:[%s684] sm:$0xf]
        %v686 = vld [vmem:[%s684 + $0x4] sm:$0xf]
        %v687 = vld [vmem:[%s684 + $0x8] sm:$0xf]
        %v688 = vld [vmem:[%s684 + $0xc] sm:$0xf]
        %v689 = vld [vmem:[%s684 + $0x10] sm:$0xf]
        %v690 = vld [vmem:[%s684 + $0x14] sm:$0xf]
        %v691 = vld [vmem:[%s684 + $0x18] sm:$0xf]
        %v692 = vld [vmem:[%s684 + $0x1c] sm:$0xf]
        %v693 = vld [vmem:[%s684 + $0x20] sm:$0xf]
        %v694 = vld [vmem:[%s684 + $0x24] sm:$0xf]
        %v695 = vld [vmem:[%s684 + $0x28] sm:$0xf]
        %v696 = vld [vmem:[%s684 + $0x2c] sm:$0xf]
        %v697 = vld [vmem:[%s684 + $0x30] sm:$0xf]
        %v698 = vld [vmem:[%s684 + $0x34] sm:$0xf]
        %v699 = vld [vmem:[%s684 + $0x38] sm:$0xf]
        %v700 = vld [vmem:[%s684 + $0x3c] sm:$0xf]
        %vm701 = vsmask.f32 6400
        %v703 = vshrl.u32 %v567, 16
        %v705 = vrot.slane %v703, 1
        %v706 = vshll.u32 %v567, 16
        %v708 = vrot.slane %v706, 2
        %v709 = vor.u32 %v705, %v708
        %v711 = vshrl.u32 %v683, 16
        %v713 = vrot.slane %v711, 1
        %v714 = vshll.u32 %v683, 16
        %v716 = vrot.slane %v714, 2
        %v717 = vor.u32 %v713, %v716
        %v718 = vsel %vm701, %v709, %v717
        %v736 = vunpack.c.l.b16 %v685
        %v737 = vunpack.c.l.b16 %v686
        %v738 = vunpack.c.l.b16 %v687
        %v739 = vunpack.c.l.b16 %v688
        %v740 = vunpack.c.l.b16 %v689
        %v741 = vunpack.c.l.b16 %v690
        %v742 = vunpack.c.l.b16 %v691
        %v743 = vunpack.c.l.b16 %v692
        %v744 = vunpack.c.l.b16 %v693
        %v745 = vunpack.c.l.b16 %v694
        %v746 = vunpack.c.l.b16 %v695
        %v747 = vunpack.c.l.b16 %v696
        %v748 = vunpack.c.l.b16 %v697
        %v749 = vunpack.c.l.b16 %v698
        %v750 = vunpack.c.l.b16 %v699
        %v751 = vunpack.c.l.b16 %v700
        %v752 = vpack.c.b16 %v737, %v736
        %v753 = vpack.c.b16 %v739, %v738
        %v754 = vpack.c.b16 %v741, %v740
        %v755 = vpack.c.b16 %v743, %v742
        %v756 = vpack.c.b16 %v745, %v744
        %v757 = vpack.c.b16 %v747, %v746
        %v758 = vpack.c.b16 %v749, %v748
        %v759 = vpack.c.b16 %v751, %v750
        %768 = vmatprep.subr.bf16.mxu0 0
        %769 = vmatpush1.bf16.msra.mxu0 %v752
        %770 = vmatprep.subr.bf16.mxu0 0
        %771 = vmatpush1.bf16.msra.mxu0 %v753
        %772 = vmatprep.subr.bf16.mxu0 0
        %773 = vmatpush1.bf16.msra.mxu0 %v754
        %774 = vmatprep.subr.bf16.mxu0 0
        %775 = vmatpush1.bf16.msra.mxu0 %v755
        %776 = vmatprep.subr.bf16.mxu0 0
        %777 = vmatpush1.bf16.msra.mxu0 %v756
        %778 = vmatprep.subr.bf16.mxu0 0
        %779 = vmatpush1.bf16.msra.mxu0 %v757
        %780 = vmatprep.subr.bf16.mxu0 0
        %781 = vmatpush1.bf16.msra.mxu0 %v758
        %782 = vmatprep.subr.bf16.mxu0 0
        %783 = vmatpush1.bf16.msra.mxu0 %v759
        %784 = vmatprep.subr.bf16.mxu0 0
        %785 = vmatpush1.bf16.msra.mxu0 0
        %786 = vmatprep.subr.bf16.mxu0 0
        %787 = vmatpush1.bf16.msra.mxu0 0
        %788 = vmatprep.subr.bf16.mxu0 0
        %789 = vmatpush1.bf16.msra.mxu0 0
        %790 = vmatprep.subr.bf16.mxu0 0
        %791 = vmatpush1.bf16.msra.mxu0 0
        %792 = vmatprep.subr.bf16.mxu0 0
        %793 = vmatpush1.bf16.msra.mxu0 0
        %794 = vmatprep.subr.bf16.mxu0 0
        %795 = vmatpush1.bf16.msra.mxu0 0
        %796 = vmatprep.subr.bf16.mxu0 0
        %797 = vmatpush1.bf16.msra.mxu0 0
        %798 = vmatprep.subr.bf16.mxu0 0
        %799 = vmatpush1.bf16.msra.mxu0 0
        %800 = vmatprep.mubr.bf16.mxu0 0
        %801 = vmatmul.mubr.bf16.gmra.mrb[0].mxu0 %v718
        %v802 = vpop.f32.mrb[0].mxu0
        %v803 = vadd.f32 0.0, %v802
        %v804 = vpop.f32.mrb[0].mxu0
        %v805 = vpop.f32.mrb[0].mxu0
        %v806 = vadd.f32 0.0, %v805
        %v807 = vpop.f32.mrb[0].mxu0
        %808 = vdwg.mxu0
        %v809 = vadd.f32 %v681, %v803
        %v810 = vadd.f32 %v682, %v806
        %v811 = vld [vmem:[#allocation2] sm:$0xfc]
        %s812 = scalar_lea.vmem [#allocation4], 256
        %v813 = vld [vmem:[%s812] sm:$0xf]
        %v814 = vld [vmem:[%s812 + $0x4] sm:$0xf]
        %v815 = vld [vmem:[%s812 + $0x8] sm:$0xf]
        %v816 = vld [vmem:[%s812 + $0xc] sm:$0xf]
        %v817 = vld [vmem:[%s812 + $0x10] sm:$0xf]
        %v818 = vld [vmem:[%s812 + $0x14] sm:$0xf]
        %v819 = vld [vmem:[%s812 + $0x18] sm:$0xf]
        %v820 = vld [vmem:[%s812 + $0x1c] sm:$0xf]
        %v821 = vld [vmem:[%s812 + $0x20] sm:$0xf]
        %v822 = vld [vmem:[%s812 + $0x24] sm:$0xf]
        %v823 = vld [vmem:[%s812 + $0x28] sm:$0xf]
        %v824 = vld [vmem:[%s812 + $0x2c] sm:$0xf]
        %v825 = vld [vmem:[%s812 + $0x30] sm:$0xf]
        %v826 = vld [vmem:[%s812 + $0x34] sm:$0xf]
        %v827 = vld [vmem:[%s812 + $0x38] sm:$0xf]
        %v828 = vld [vmem:[%s812 + $0x3c] sm:$0xf]
        %vm831 = vcmask 1045504
        %v832 = vrot.slane %v811, 2
        %v833 = vrot.slane %v683, 2
        %v834 = vsel %vm831, %v832, %v833
        %v852 = vunpack.c.l.b16 %v813
        %v853 = vunpack.c.l.b16 %v814
        %v854 = vunpack.c.l.b16 %v815
        %v855 = vunpack.c.l.b16 %v816
        %v856 = vunpack.c.l.b16 %v817
        %v857 = vunpack.c.l.b16 %v818
        %v858 = vunpack.c.l.b16 %v819
        %v859 = vunpack.c.l.b16 %v820
        %v860 = vunpack.c.l.b16 %v821
        %v861 = vunpack.c.l.b16 %v822
        %v862 = vunpack.c.l.b16 %v823
        %v863 = vunpack.c.l.b16 %v824
        %v864 = vunpack.c.l.b16 %v825
        %v865 = vunpack.c.l.b16 %v826
        %v866 = vunpack.c.l.b16 %v827
        %v867 = vunpack.c.l.b16 %v828
        %v868 = vpack.c.b16 %v853, %v852
        %v869 = vpack.c.b16 %v855, %v854
        %v870 = vpack.c.b16 %v857, %v856
        %v871 = vpack.c.b16 %v859, %v858
        %v872 = vpack.c.b16 %v861, %v860
        %v873 = vpack.c.b16 %v863, %v862
        %v874 = vpack.c.b16 %v865, %v864
        %v875 = vpack.c.b16 %v867, %v866
        %884 = vmatprep.subr.bf16.mxu0 0
        %885 = vmatpush1.bf16.msra.mxu0 %v868
        %886 = vmatprep.subr.bf16.mxu0 0
        %887 = vmatpush1.bf16.msra.mxu0 %v869
        %888 = vmatprep.subr.bf16.mxu0 0
        %889 = vmatpush1.bf16.msra.mxu0 %v870
        %890 = vmatprep.subr.bf16.mxu0 0
        %891 = vmatpush1.bf16.msra.mxu0 %v871
        %892 = vmatprep.subr.bf16.mxu0 0
        %893 = vmatpush1.bf16.msra.mxu0 %v872
        %894 = vmatprep.subr.bf16.mxu0 0
        %895 = vmatpush1.bf16.msra.mxu0 %v873
        %896 = vmatprep.subr.bf16.mxu0 0
        %897 = vmatpush1.bf16.msra.mxu0 %v874
        %898 = vmatprep.subr.bf16.mxu0 0
        %899 = vmatpush1.bf16.msra.mxu0 %v875
        %900 = vmatprep.subr.bf16.mxu0 0
        %901 = vmatpush1.bf16.msra.mxu0 0
        %902 = vmatprep.subr.bf16.mxu0 0
        %903 = vmatpush1.bf16.msra.mxu0 0
        %904 = vmatprep.subr.bf16.mxu0 0
        %905 = vmatpush1.bf16.msra.mxu0 0
        %906 = vmatprep.subr.bf16.mxu0 0
        %907 = vmatpush1.bf16.msra.mxu0 0
        %908 = vmatprep.subr.bf16.mxu0 0
        %909 = vmatpush1.bf16.msra.mxu0 0
        %910 = vmatprep.subr.bf16.mxu0 0
        %911 = vmatpush1.bf16.msra.mxu0 0
        %912 = vmatprep.subr.bf16.mxu0 0
        %913 = vmatpush1.bf16.msra.mxu0 0
        %914 = vmatprep.subr.bf16.mxu0 0
        %915 = vmatpush1.bf16.msra.mxu0 0
        %916 = vmatprep.mubr.bf16.mxu0 0
        %917 = vmatmul.mubr.bf16.gmra.mrb[0].mxu0 %v834
        %v918 = vpop.f32.mrb[0].mxu0
        %v919 = vadd.f32 0.0, %v918
        %v920 = vpop.f32.mrb[0].mxu0
        %v921 = vpop.f32.mrb[0].mxu0
        %v922 = vadd.f32 0.0, %v921
        %v923 = vpop.f32.mrb[0].mxu0
        %924 = vdwg.mxu0
        %v925 = vadd.f32 %v809, %v919
        %v926 = vadd.f32 %v810, %v922
        %v927 = vld [vmem:[%s4] sm:$0x1]
        %v928 = vlaneseq
        %v929 = vshrl.u32 %v928, 7
        %v930 = vsub.s32 0, %v929
        %v931 = vrot.slane %v927, %v930
        %v932 = vmul.f32 %v925, %v931
        %v933 = vmul.f32 %v926, %v931
        %v934 = vld [vmem:[%s4 + $0x1] sm:$0x1]
        %v935 = vlaneseq
        %v936 = vshrl.u32 %v935, 7
        %v937 = vsub.s32 0, %v936
        %v938 = vrot.slane %v934, %v937
        %v939 = vadd.f32 %v932, %v938
        %v940 = vadd.f32 %v933, %v938
        %v941 = vpack.c.bf16 %v940, %v939
        %v942 = vtanh.bf16.pop %v941
        %v944 = vrot.slane %v942, 7
        %946 = vst [vmem:[#allocation3] sm:$0xfe] %v944
        %947 = vst [vmem:[#allocation3 + $0x8] sm:$0x1] %v944
        %v948 = vld [vmem:[#allocation3] sm:$0xff]
        %v949 = vld [vmem:[#allocation6] sm:$0xf]
        %v950 = vld [vmem:[#allocation6 + $0x4] sm:$0xf]
        %v951 = vld [vmem:[#allocation6 + $0x8] sm:$0xf]
        %v952 = vld [vmem:[#allocation6 + $0xc] sm:$0xf]
        %v953 = vld [vmem:[#allocation6 + $0x10] sm:$0xf]
        %v954 = vld [vmem:[#allocation6 + $0x14] sm:$0xf]
        %v955 = vld [vmem:[#allocation6 + $0x18] sm:$0xf]
        %v956 = vld [vmem:[#allocation6 + $0x1c] sm:$0xf]
        %v957 = vld [vmem:[#allocation6 + $0x20] sm:$0xf]
        %v958 = vld [vmem:[#allocation6 + $0x24] sm:$0xf]
        %v959 = vld [vmem:[#allocation6 + $0x28] sm:$0xf]
        %v960 = vld [vmem:[#allocation6 + $0x2c] sm:$0xf]
        %v961 = vld [vmem:[#allocation6 + $0x30] sm:$0xf]
        %v962 = vld [vmem:[#allocation6 + $0x34] sm:$0xf]
        %v963 = vld [vmem:[#allocation6 + $0x38] sm:$0xf]
        %v964 = vld [vmem:[#allocation6 + $0x3c] sm:$0xf]
        %v965 = vld [vmem:[#allocation3] sm:$0xff]
        %v966 = vld [vmem:[#allocation3 + $0x8] sm:$0x1]
        %s967 = scalar_lea.vmem [#allocation6], 64
        %v968 = vld [vmem:[%s967] sm:$0xf]
        %v969 = vld [vmem:[%s967 + $0x4] sm:$0xf]
        %v970 = vld [vmem:[%s967 + $0x8] sm:$0xf]
        %v971 = vld [vmem:[%s967 + $0xc] sm:$0xf]
        %v972 = vld [vmem:[%s967 + $0x10] sm:$0xf]
        %v973 = vld [vmem:[%s967 + $0x14] sm:$0xf]
        %v974 = vld [vmem:[%s967 + $0x18] sm:$0xf]
        %v975 = vld [vmem:[%s967 + $0x1c] sm:$0xf]
        %v976 = vld [vmem:[%s967 + $0x20] sm:$0xf]
        %v977 = vld [vmem:[%s967 + $0x24] sm:$0xf]
        %v978 = vld [vmem:[%s967 + $0x28] sm:$0xf]
        %v979 = vld [vmem:[%s967 + $0x2c] sm:$0xf]
        %v980 = vld [vmem:[%s967 + $0x30] sm:$0xf]
        %v981 = vld [vmem:[%s967 + $0x34] sm:$0xf]
        %v982 = vld [vmem:[%s967 + $0x38] sm:$0xf]
        %v983 = vld [vmem:[%s967 + $0x3c] sm:$0xf]
        %v985 = vshrl.u32 %v965, 16
        %v987 = vshll.u32 %v965, 16
        %v989 = vrot.slane %v987, 1
        %v990 = vor.u32 %v985, %v989
        %v992 = vshll.u32 %v966, 16
        %v994 = vrot.slane %v992, 1
        %v995 = vsel %vm375, %v990, %v994
        %v1013 = vunpack.c.l.b16 %v968
        %v1014 = vunpack.c.l.b16 %v969
        %v1015 = vunpack.c.l.b16 %v970
        %v1016 = vunpack.c.l.b16 %v971
        %v1017 = vunpack.c.l.b16 %v972
        %v1018 = vunpack.c.l.b16 %v973
        %v1019 = vunpack.c.l.b16 %v974
        %v1020 = vunpack.c.l.b16 %v975
        %v1021 = vunpack.c.l.b16 %v976
        %v1022 = vunpack.c.l.b16 %v977
        %v1023 = vunpack.c.l.b16 %v978
        %v1024 = vunpack.c.l.b16 %v979
        %v1025 = vunpack.c.l.b16 %v980
        %v1026 = vunpack.c.l.b16 %v981
        %v1027 = vunpack.c.l.b16 %v982
        %v1028 = vunpack.c.l.b16 %v983
        %v1029 = vpack.c.b16 %v1014, %v1013
        %v1030 = vpack.c.b16 %v1016, %v1015
        %v1031 = vpack.c.b16 %v1018, %v1017
        %v1032 = vpack.c.b16 %v1020, %v1019
        %v1033 = vpack.c.b16 %v1022, %v1021
        %v1034 = vpack.c.b16 %v1024, %v1023
        %v1035 = vpack.c.b16 %v1026, %v1025
        %v1036 = vpack.c.b16 %v1028, %v1027
        %1045 = vmatprep.subr.bf16.mxu0 0
        %1046 = vmatpush1.bf16.msra.mxu0 %v1029
        %1047 = vmatprep.subr.bf16.mxu0 0
        %1048 = vmatpush1.bf16.msra.mxu0 %v1030
        %1049 = vmatprep.subr.bf16.mxu0 0
        %1050 = vmatpush1.bf16.msra.mxu0 %v1031
        %1051 = vmatprep.subr.bf16.mxu0 0
        %1052 = vmatpush1.bf16.msra.mxu0 %v1032
        %1053 = vmatprep.subr.bf16.mxu0 0
        %1054 = vmatpush1.bf16.msra.mxu0 %v1033
        %1055 = vmatprep.subr.bf16.mxu0 0
        %1056 = vmatpush1.bf16.msra.mxu0 %v1034
        %1057 = vmatprep.subr.bf16.mxu0 0
        %1058 = vmatpush1.bf16.msra.mxu0 %v1035
        %1059 = vmatprep.subr.bf16.mxu0 0
        %1060 = vmatpush1.bf16.msra.mxu0 %v1036
        %1061 = vmatprep.subr.bf16.mxu0 0
        %1062 = vmatpush1.bf16.msra.mxu0 0
        %1063 = vmatprep.subr.bf16.mxu0 0
        %1064 = vmatpush1.bf16.msra.mxu0 0
        %1065 = vmatprep.subr.bf16.mxu0 0
        %1066 = vmatpush1.bf16.msra.mxu0 0
        %1067 = vmatprep.subr.bf16.mxu0 0
        %1068 = vmatpush1.bf16.msra.mxu0 0
        %1069 = vmatprep.subr.bf16.mxu0 0
        %1070 = vmatpush1.bf16.msra.mxu0 0
        %1071 = vmatprep.subr.bf16.mxu0 0
        %1072 = vmatpush1.bf16.msra.mxu0 0
        %1073 = vmatprep.subr.bf16.mxu0 0
        %1074 = vmatpush1.bf16.msra.mxu0 0
        %1075 = vmatprep.subr.bf16.mxu0 0
        %1076 = vmatpush1.bf16.msra.mxu0 0
        %1077 = vmatprep.mubr.bf16.mxu0 0
        %1078 = vmatmul.mubr.bf16.gmra.mrb[0].mxu0 %v995
        %v1079 = vpop.f32.mrb[0].mxu0
        %v1080 = vadd.f32 0.0, %v1079
        %v1081 = vpop.f32.mrb[0].mxu0
        %v1082 = vpop.f32.mrb[0].mxu0
        %v1083 = vadd.f32 0.0, %v1082
        %v1084 = vpop.f32.mrb[0].mxu0
        %1085 = vdwg.mxu0
        %v1102 = vunpack.c.l.b16 %v949
        %v1103 = vunpack.c.l.b16 %v950
        %v1104 = vunpack.c.l.b16 %v951
        %v1105 = vunpack.c.l.b16 %v952
        %v1106 = vunpack.c.l.b16 %v953
        %v1107 = vunpack.c.l.b16 %v954
        %v1108 = vunpack.c.l.b16 %v955
        %v1109 = vunpack.c.l.b16 %v956
        %v1110 = vunpack.c.l.b16 %v957
        %v1111 = vunpack.c.l.b16 %v958
        %v1112 = vunpack.c.l.b16 %v959
        %v1113 = vunpack.c.l.b16 %v960
        %v1114 = vunpack.c.l.b16 %v961
        %v1115 = vunpack.c.l.b16 %v962
        %v1116 = vunpack.c.l.b16 %v963
        %v1117 = vunpack.c.l.b16 %v964
        %v1118 = vpack.c.b16 %v1103, %v1102
        %v1119 = vpack.c.b16 %v1105, %v1104
        %v1120 = vpack.c.b16 %v1107, %v1106
        %v1121 = vpack.c.b16 %v1109, %v1108
        %v1122 = vpack.c.b16 %v1111, %v1110
        %v1123 = vpack.c.b16 %v1113, %v1112
        %v1124 = vpack.c.b16 %v1115, %v1114
        %v1125 = vpack.c.b16 %v1117, %v1116
        %1134 = vmatprep.subr.bf16.mxu0 0
        %1135 = vmatpush1.bf16.msra.mxu0 %v1118
        %1136 = vmatprep.subr.bf16.mxu0 0
        %1137 = vmatpush1.bf16.msra.mxu0 %v1119
        %1138 = vmatprep.subr.bf16.mxu0 0
        %1139 = vmatpush1.bf16.msra.mxu0 %v1120
        %1140 = vmatprep.subr.bf16.mxu0 0
        %1141 = vmatpush1.bf16.msra.mxu0 %v1121
        %1142 = vmatprep.subr.bf16.mxu0 0
        %1143 = vmatpush1.bf16.msra.mxu0 %v1122
        %1144 = vmatprep.subr.bf16.mxu0 0
        %1145 = vmatpush1.bf16.msra.mxu0 %v1123
        %1146 = vmatprep.subr.bf16.mxu0 0
        %1147 = vmatpush1.bf16.msra.mxu0 %v1124
        %1148 = vmatprep.subr.bf16.mxu0 0
        %1149 = vmatpush1.bf16.msra.mxu0 %v1125
        %1150 = vmatprep.subr.bf16.mxu0 0
        %1151 = vmatpush1.bf16.msra.mxu0 0
        %1152 = vmatprep.subr.bf16.mxu0 0
        %1153 = vmatpush1.bf16.msra.mxu0 0
        %1154 = vmatprep.subr.bf16.mxu0 0
        %1155 = vmatpush1.bf16.msra.mxu0 0
        %1156 = vmatprep.subr.bf16.mxu0 0
        %1157 = vmatpush1.bf16.msra.mxu0 0
        %1158 = vmatprep.subr.bf16.mxu0 0
        %1159 = vmatpush1.bf16.msra.mxu0 0
        %1160 = vmatprep.subr.bf16.mxu0 0
        %1161 = vmatpush1.bf16.msra.mxu0 0
        %1162 = vmatprep.subr.bf16.mxu0 0
        %1163 = vmatpush1.bf16.msra.mxu0 0
        %1164 = vmatprep.subr.bf16.mxu0 0
        %1165 = vmatpush1.bf16.msra.mxu0 0
        %1166 = vmatprep.mubr.bf16.mxu0 0
        %1167 = vmatmul.mubr.bf16.gmra.mrb[0].mxu0 %v948
        %v1168 = vpop.f32.mrb[0].mxu0
        %v1169 = vadd.f32 %v1080, %v1168
        %v1170 = vpop.f32.mrb[0].mxu0
        %v1171 = vpop.f32.mrb[0].mxu0
        %v1172 = vadd.f32 %v1083, %v1171
        %v1173 = vpop.f32.mrb[0].mxu0
        %1174 = vdwg.mxu0
        %v1175 = vld [vmem:[#allocation3] sm:$0xfe]
        %s1176 = scalar_lea.vmem [#allocation6], 128
        %v1177 = vld [vmem:[%s1176] sm:$0xf]
        %v1178 = vld [vmem:[%s1176 + $0x4] sm:$0xf]
        %v1179 = vld [vmem:[%s1176 + $0x8] sm:$0xf]
        %v1180 = vld [vmem:[%s1176 + $0xc] sm:$0xf]
        %v1181 = vld [vmem:[%s1176 + $0x10] sm:$0xf]
        %v1182 = vld [vmem:[%s1176 + $0x14] sm:$0xf]
        %v1183 = vld [vmem:[%s1176 + $0x18] sm:$0xf]
        %v1184 = vld [vmem:[%s1176 + $0x1c] sm:$0xf]
        %v1185 = vld [vmem:[%s1176 + $0x20] sm:$0xf]
        %v1186 = vld [vmem:[%s1176 + $0x24] sm:$0xf]
        %v1187 = vld [vmem:[%s1176 + $0x28] sm:$0xf]
        %v1188 = vld [vmem:[%s1176 + $0x2c] sm:$0xf]
        %v1189 = vld [vmem:[%s1176 + $0x30] sm:$0xf]
        %v1190 = vld [vmem:[%s1176 + $0x34] sm:$0xf]
        %v1191 = vld [vmem:[%s1176 + $0x38] sm:$0xf]
        %v1192 = vld [vmem:[%s1176 + $0x3c] sm:$0xf]
        %v1195 = vrot.slane %v1175, 1
        %v1196 = vrot.slane %v966, 1
        %v1197 = vsel %vm587, %v1195, %v1196
        %v1215 = vunpack.c.l.b16 %v1177
        %v1216 = vunpack.c.l.b16 %v1178
        %v1217 = vunpack.c.l.b16 %v1179
        %v1218 = vunpack.c.l.b16 %v1180
        %v1219 = vunpack.c.l.b16 %v1181
        %v1220 = vunpack.c.l.b16 %v1182
        %v1221 = vunpack.c.l.b16 %v1183
        %v1222 = vunpack.c.l.b16 %v1184
        %v1223 = vunpack.c.l.b16 %v1185
        %v1224 = vunpack.c.l.b16 %v1186
        %v1225 = vunpack.c.l.b16 %v1187
        %v1226 = vunpack.c.l.b16 %v1188
        %v1227 = vunpack.c.l.b16 %v1189
        %v1228 = vunpack.c.l.b16 %v1190
        %v1229 = vunpack.c.l.b16 %v1191
        %v1230 = vunpack.c.l.b16 %v1192
        %v1231 = vpack.c.b16 %v1216, %v1215
        %v1232 = vpack.c.b16 %v1218, %v1217
        %v1233 = vpack.c.b16 %v1220, %v1219
        %v1234 = vpack.c.b16 %v1222, %v1221
        %v1235 = vpack.c.b16 %v1224, %v1223
        %v1236 = vpack.c.b16 %v1226, %v1225
        %v1237 = vpack.c.b16 %v1228, %v1227
        %v1238 = vpack.c.b16 %v1230, %v1229
        %1247 = vmatprep.subr.bf16.mxu0 0
        %1248 = vmatpush1.bf16.msra.mxu0 %v1231
        %1249 = vmatprep.subr.bf16.mxu0 0
        %1250 = vmatpush1.bf16.msra.mxu0 %v1232
        %1251 = vmatprep.subr.bf16.mxu0 0
        %1252 = vmatpush1.bf16.msra.mxu0 %v1233
        %1253 = vmatprep.subr.bf16.mxu0 0
        %1254 = vmatpush1.bf16.msra.mxu0 %v1234
        %1255 = vmatprep.subr.bf16.mxu0 0
        %1256 = vmatpush1.bf16.msra.mxu0 %v1235
        %1257 = vmatprep.subr.bf16.mxu0 0
        %1258 = vmatpush1.bf16.msra.mxu0 %v1236
        %1259 = vmatprep.subr.bf16.mxu0 0
        %1260 = vmatpush1.bf16.msra.mxu0 %v1237
        %1261 = vmatprep.subr.bf16.mxu0 0
        %1262 = vmatpush1.bf16.msra.mxu0 %v1238
        %1263 = vmatprep.subr.bf16.mxu0 0
        %1264 = vmatpush1.bf16.msra.mxu0 0
        %1265 = vmatprep.subr.bf16.mxu0 0
        %1266 = vmatpush1.bf16.msra.mxu0 0
        %1267 = vmatprep.subr.bf16.mxu0 0
        %1268 = vmatpush1.bf16.msra.mxu0 0
        %1269 = vmatprep.subr.bf16.mxu0 0
        %1270 = vmatpush1.bf16.msra.mxu0 0
        %1271 = vmatprep.subr.bf16.mxu0 0
        %1272 = vmatpush1.bf16.msra.mxu0 0
        %1273 = vmatprep.subr.bf16.mxu0 0
        %1274 = vmatpush1.bf16.msra.mxu0 0
        %1275 = vmatprep.subr.bf16.mxu0 0
        %1276 = vmatpush1.bf16.msra.mxu0 0
        %1277 = vmatprep.subr.bf16.mxu0 0
        %1278 = vmatpush1.bf16.msra.mxu0 0
        %1279 = vmatprep.mubr.bf16.mxu0 0
        %1280 = vmatmul.mubr.bf16.gmra.mrb[0].mxu0 %v1197
        %v1281 = vpop.f32.mrb[0].mxu0
        %v1282 = vadd.f32 0.0, %v1281
        %v1283 = vpop.f32.mrb[0].mxu0
        %v1284 = vpop.f32.mrb[0].mxu0
        %v1285 = vadd.f32 0.0, %v1284
        %v1286 = vpop.f32.mrb[0].mxu0
        %1287 = vdwg.mxu0
        %v1288 = vadd.f32 %v1169, %v1282
        %v1289 = vadd.f32 %v1172, %v1285
        %v1290 = vld [vmem:[#allocation3 + $0x8] sm:$0x3]
        %s1291 = scalar_lea.vmem [#allocation6], 192
        %v1292 = vld [vmem:[%s1291] sm:$0xf]
        %v1293 = vld [vmem:[%s1291 + $0x4] sm:$0xf]
        %v1294 = vld [vmem:[%s1291 + $0x8] sm:$0xf]
        %v1295 = vld [vmem:[%s1291 + $0xc] sm:$0xf]
        %v1296 = vld [vmem:[%s1291 + $0x10] sm:$0xf]
        %v1297 = vld [vmem:[%s1291 + $0x14] sm:$0xf]
        %v1298 = vld [vmem:[%s1291 + $0x18] sm:$0xf]
        %v1299 = vld [vmem:[%s1291 + $0x1c] sm:$0xf]
        %v1300 = vld [vmem:[%s1291 + $0x20] sm:$0xf]
        %v1301 = vld [vmem:[%s1291 + $0x24] sm:$0xf]
        %v1302 = vld [vmem:[%s1291 + $0x28] sm:$0xf]
        %v1303 = vld [vmem:[%s1291 + $0x2c] sm:$0xf]
        %v1304 = vld [vmem:[%s1291 + $0x30] sm:$0xf]
        %v1305 = vld [vmem:[%s1291 + $0x34] sm:$0xf]
        %v1306 = vld [vmem:[%s1291 + $0x38] sm:$0xf]
        %v1307 = vld [vmem:[%s1291 + $0x3c] sm:$0xf]
        %v1309 = vshrl.u32 %v1175, 16
        %v1311 = vrot.slane %v1309, 1
        %v1312 = vshll.u32 %v1175, 16
        %v1314 = vrot.slane %v1312, 2
        %v1315 = vor.u32 %v1311, %v1314
        %v1317 = vshrl.u32 %v1290, 16
        %v1319 = vrot.slane %v1317, 1
        %v1320 = vshll.u32 %v1290, 16
        %v1322 = vrot.slane %v1320, 2
        %v1323 = vor.u32 %v1319, %v1322
        %v1324 = vsel %vm701, %v1315, %v1323
        %v1342 = vunpack.c.l.b16 %v1292
        %v1343 = vunpack.c.l.b16 %v1293
        %v1344 = vunpack.c.l.b16 %v1294
        %v1345 = vunpack.c.l.b16 %v1295
        %v1346 = vunpack.c.l.b16 %v1296
        %v1347 = vunpack.c.l.b16 %v1297
        %v1348 = vunpack.c.l.b16 %v1298
        %v1349 = vunpack.c.l.b16 %v1299
        %v1350 = vunpack.c.l.b16 %v1300
        %v1351 = vunpack.c.l.b16 %v1301
        %v1352 = vunpack.c.l.b16 %v1302
        %v1353 = vunpack.c.l.b16 %v1303
        %v1354 = vunpack.c.l.b16 %v1304
        %v1355 = vunpack.c.l.b16 %v1305
        %v1356 = vunpack.c.l.b16 %v1306
        %v1357 = vunpack.c.l.b16 %v1307
        %v1358 = vpack.c.b16 %v1343, %v1342
        %v1359 = vpack.c.b16 %v1345, %v1344
        %v1360 = vpack.c.b16 %v1347, %v1346
        %v1361 = vpack.c.b16 %v1349, %v1348
        %v1362 = vpack.c.b16 %v1351, %v1350
        %v1363 = vpack.c.b16 %v1353, %v1352
        %v1364 = vpack.c.b16 %v1355, %v1354
        %v1365 = vpack.c.b16 %v1357, %v1356
        %1374 = vmatprep.subr.bf16.mxu0 0
        %1375 = vmatpush1.bf16.msra.mxu0 %v1358
        %1376 = vmatprep.subr.bf16.mxu0 0
        %1377 = vmatpush1.bf16.msra.mxu0 %v1359
        %1378 = vmatprep.subr.bf16.mxu0 0
        %1379 = vmatpush1.bf16.msra.mxu0 %v1360
        %1380 = vmatprep.subr.bf16.mxu0 0
        %1381 = vmatpush1.bf16.msra.mxu0 %v1361
        %1382 = vmatprep.subr.bf16.mxu0 0
        %1383 = vmatpush1.bf16.msra.mxu0 %v1362
        %1384 = vmatprep.subr.bf16.mxu0 0
        %1385 = vmatpush1.bf16.msra.mxu0 %v1363
        %1386 = vmatprep.subr.bf16.mxu0 0
        %1387 = vmatpush1.bf16.msra.mxu0 %v1364
        %1388 = vmatprep.subr.bf16.mxu0 0
        %1389 = vmatpush1.bf16.msra.mxu0 %v1365
        %1390 = vmatprep.subr.bf16.mxu0 0
        %1391 = vmatpush1.bf16.msra.mxu0 0
        %1392 = vmatprep.subr.bf16.mxu0 0
        %1393 = vmatpush1.bf16.msra.mxu0 0
        %1394 = vmatprep.subr.bf16.mxu0 0
        %1395 = vmatpush1.bf16.msra.mxu0 0
        %1396 = vmatprep.subr.bf16.mxu0 0
        %1397 = vmatpush1.bf16.msra.mxu0 0
        %1398 = vmatprep.subr.bf16.mxu0 0
        %1399 = vmatpush1.bf16.msra.mxu0 0
        %1400 = vmatprep.subr.bf16.mxu0 0
        %1401 = vmatpush1.bf16.msra.mxu0 0
        %1402 = vmatprep.subr.bf16.mxu0 0
        %1403 = vmatpush1.bf16.msra.mxu0 0
        %1404 = vmatprep.subr.bf16.mxu0 0
        %1405 = vmatpush1.bf16.msra.mxu0 0
        %1406 = vmatprep.mubr.bf16.mxu0 0
        %1407 = vmatmul.mubr.bf16.gmra.mrb[0].mxu0 %v1324
        %v1408 = vpop.f32.mrb[0].mxu0
        %v1409 = vadd.f32 0.0, %v1408
        %v1410 = vpop.f32.mrb[0].mxu0
        %v1411 = vpop.f32.mrb[0].mxu0
        %v1412 = vadd.f32 0.0, %v1411
        %v1413 = vpop.f32.mrb[0].mxu0
        %1414 = vdwg.mxu0
        %v1415 = vadd.f32 %v1288, %v1409
        %v1416 = vadd.f32 %v1289, %v1412
        %v1417 = vld [vmem:[#allocation3] sm:$0xfc]
        %s1418 = scalar_lea.vmem [#allocation6], 256
        %v1419 = vld [vmem:[%s1418] sm:$0xf]
        %v1420 = vld [vmem:[%s1418 + $0x4] sm:$0xf]
        %v1421 = vld [vmem:[%s1418 + $0x8] sm:$0xf]
        %v1422 = vld [vmem:[%s1418 + $0xc] sm:$0xf]
        %v1423 = vld [vmem:[%s1418 + $0x10] sm:$0xf]
        %v1424 = vld [vmem:[%s1418 + $0x14] sm:$0xf]
        %v1425 = vld [vmem:[%s1418 + $0x18] sm:$0xf]
        %v1426 = vld [vmem:[%s1418 + $0x1c] sm:$0xf]
        %v1427 = vld [vmem:[%s1418 + $0x20] sm:$0xf]
        %v1428 = vld [vmem:[%s1418 + $0x24] sm:$0xf]
        %v1429 = vld [vmem:[%s1418 + $0x28] sm:$0xf]
        %v1430 = vld [vmem:[%s1418 + $0x2c] sm:$0xf]
        %v1431 = vld [vmem:[%s1418 + $0x30] sm:$0xf]
        %v1432 = vld [vmem:[%s1418 + $0x34] sm:$0xf]
        %v1433 = vld [vmem:[%s1418 + $0x38] sm:$0xf]
        %v1434 = vld [vmem:[%s1418 + $0x3c] sm:$0xf]
        %v1437 = vrot.slane %v1417, 2
        %v1438 = vrot.slane %v1290, 2
        %v1439 = vsel %vm831, %v1437, %v1438
        %v1457 = vunpack.c.l.b16 %v1419
        %v1458 = vunpack.c.l.b16 %v1420
        %v1459 = vunpack.c.l.b16 %v1421
        %v1460 = vunpack.c.l.b16 %v1422
        %v1461 = vunpack.c.l.b16 %v1423
        %v1462 = vunpack.c.l.b16 %v1424
        %v1463 = vunpack.c.l.b16 %v1425
        %v1464 = vunpack.c.l.b16 %v1426
        %v1465 = vunpack.c.l.b16 %v1427
        %v1466 = vunpack.c.l.b16 %v1428
        %v1467 = vunpack.c.l.b16 %v1429
        %v1468 = vunpack.c.l.b16 %v1430
        %v1469 = vunpack.c.l.b16 %v1431
        %v1470 = vunpack.c.l.b16 %v1432
        %v1471 = vunpack.c.l.b16 %v1433
        %v1472 = vunpack.c.l.b16 %v1434
        %v1473 = vpack.c.b16 %v1458, %v1457
        %v1474 = vpack.c.b16 %v1460, %v1459
        %v1475 = vpack.c.b16 %v1462, %v1461
        %v1476 = vpack.c.b16 %v1464, %v1463
        %v1477 = vpack.c.b16 %v1466, %v1465
        %v1478 = vpack.c.b16 %v1468, %v1467
        %v1479 = vpack.c.b16 %v1470, %v1469
        %v1480 = vpack.c.b16 %v1472, %v1471
        %1489 = vmatprep.subr.bf16.mxu0 0
        %1490 = vmatpush1.bf16.msra.mxu0 %v1473
        %1491 = vmatprep.subr.bf16.mxu0 0
        %1492 = vmatpush1.bf16.msra.mxu0 %v1474
        %1493 = vmatprep.subr.bf16.mxu0 0
        %1494 = vmatpush1.bf16.msra.mxu0 %v1475
        %1495 = vmatprep.subr.bf16.mxu0 0
        %1496 = vmatpush1.bf16.msra.mxu0 %v1476
        %1497 = vmatprep.subr.bf16.mxu0 0
        %1498 = vmatpush1.bf16.msra.mxu0 %v1477
        %1499 = vmatprep.subr.bf16.mxu0 0
        %1500 = vmatpush1.bf16.msra.mxu0 %v1478
        %1501 = vmatprep.subr.bf16.mxu0 0
        %1502 = vmatpush1.bf16.msra.mxu0 %v1479
        %1503 = vmatprep.subr.bf16.mxu0 0
        %1504 = vmatpush1.bf16.msra.mxu0 %v1480
        %1505 = vmatprep.subr.bf16.mxu0 0
        %1506 = vmatpush1.bf16.msra.mxu0 0
        %1507 = vmatprep.subr.bf16.mxu0 0
        %1508 = vmatpush1.bf16.msra.mxu0 0
        %1509 = vmatprep.subr.bf16.mxu0 0
        %1510 = vmatpush1.bf16.msra.mxu0 0
        %1511 = vmatprep.subr.bf16.mxu0 0
        %1512 = vmatpush1.bf16.msra.mxu0 0
        %1513 = vmatprep.subr.bf16.mxu0 0
        %1514 = vmatpush1.bf16.msra.mxu0 0
        %1515 = vmatprep.subr.bf16.mxu0 0
        %1516 = vmatpush1.bf16.msra.mxu0 0
        %1517 = vmatprep.subr.bf16.mxu0 0
        %1518 = vmatpush1.bf16.msra.mxu0 0
        %1519 = vmatprep.subr.bf16.mxu0 0
        %1520 = vmatpush1.bf16.msra.mxu0 0
        %1521 = vmatprep.mubr.bf16.mxu0 0
        %1522 = vmatmul.mubr.bf16.gmra.mrb[0].mxu0 %v1439
        %v1523 = vpop.f32.mrb[0].mxu0
        %v1524 = vadd.f32 0.0, %v1523
        %v1525 = vpop.f32.mrb[0].mxu0
        %v1526 = vpop.f32.mrb[0].mxu0
        %v1527 = vadd.f32 0.0, %v1526
        %v1528 = vpop.f32.mrb[0].mxu0
        %1529 = vdwg.mxu0
        %v1530 = vadd.f32 %v1415, %v1524
        %v1531 = vadd.f32 %v1416, %v1527
        %v1532 = vld [vmem:[%s5] sm:$0x1]
        %v1533 = vlaneseq
        %v1534 = vshrl.u32 %v1533, 7
        %v1535 = vsub.s32 0, %v1534
        %v1536 = vrot.slane %v1532, %v1535
        %v1537 = vmul.f32 %v1530, %v1536
        %v1538 = vmul.f32 %v1531, %v1536
        %v1539 = vld [vmem:[%s5 + $0x1] sm:$0x1]
        %v1540 = vlaneseq
        %v1541 = vshrl.u32 %v1540, 7
        %v1542 = vsub.s32 0, %v1541
        %v1543 = vrot.slane %v1539, %v1542
        %v1544 = vadd.f32 %v1537, %v1543
        %v1545 = vadd.f32 %v1538, %v1543
        %v1546 = vpack.c.bf16 %v1545, %v1544
        %v1547 = vtanh.bf16.pop %v1546
        %v1549 = vrot.slane %v1547, 7
        %1551 = vst [vmem:[#allocation2] sm:$0xfe] %v1549
        %1552 = vst [vmem:[#allocation2 + $0x8] sm:$0x1] %v1549
        %v1553 = vld [vmem:[#allocation2] sm:$0xff]
        %v1554 = vld [vmem:[#allocation8] sm:$0xf]
        %v1555 = vld [vmem:[#allocation8 + $0x4] sm:$0xf]
        %v1556 = vld [vmem:[#allocation8 + $0x8] sm:$0xf]
        %v1557 = vld [vmem:[#allocation8 + $0xc] sm:$0xf]
        %v1558 = vld [vmem:[#allocation8 + $0x10] sm:$0xf]
        %v1559 = vld [vmem:[#allocation8 + $0x14] sm:$0xf]
        %v1560 = vld [vmem:[#allocation8 + $0x18] sm:$0xf]
        %v1561 = vld [vmem:[#allocation8 + $0x1c] sm:$0xf]
        %v1562 = vld [vmem:[#allocation8 + $0x20] sm:$0xf]
        %v1563 = vld [vmem:[#allocation8 + $0x24] sm:$0xf]
        %v1564 = vld [vmem:[#allocation8 + $0x28] sm:$0xf]
        %v1565 = vld [vmem:[#allocation8 + $0x2c] sm:$0xf]
        %v1566 = vld [vmem:[#allocation8 + $0x30] sm:$0xf]
        %v1567 = vld [vmem:[#allocation8 + $0x34] sm:$0xf]
        %v1568 = vld [vmem:[#allocation8 + $0x38] sm:$0xf]
        %v1569 = vld [vmem:[#allocation8 + $0x3c] sm:$0xf]
        %v1570 = vld [vmem:[#allocation2] sm:$0xff]
        %v1571 = vld [vmem:[#allocation2 + $0x8] sm:$0x1]
        %s1572 = scalar_lea.vmem [#allocation8], 64
        %v1573 = vld [vmem:[%s1572] sm:$0xf]
        %v1574 = vld [vmem:[%s1572 + $0x4] sm:$0xf]
        %v1575 = vld [vmem:[%s1572 + $0x8] sm:$0xf]
        %v1576 = vld [vmem:[%s1572 + $0xc] sm:$0xf]
        %v1577 = vld [vmem:[%s1572 + $0x10] sm:$0xf]
        %v1578 = vld [vmem:[%s1572 + $0x14] sm:$0xf]
        %v1579 = vld [vmem:[%s1572 + $0x18] sm:$0xf]
        %v1580 = vld [vmem:[%s1572 + $0x1c] sm:$0xf]
        %v1581 = vld [vmem:[%s1572 + $0x20] sm:$0xf]
        %v1582 = vld [vmem:[%s1572 + $0x24] sm:$0xf]
        %v1583 = vld [vmem:[%s1572 + $0x28] sm:$0xf]
        %v1584 = vld [vmem:[%s1572 + $0x2c] sm:$0xf]
        %v1585 = vld [vmem:[%s1572 + $0x30] sm:$0xf]
        %v1586 = vld [vmem:[%s1572 + $0x34] sm:$0xf]
        %v1587 = vld [vmem:[%s1572 + $0x38] sm:$0xf]
        %v1588 = vld [vmem:[%s1572 + $0x3c] sm:$0xf]
        %v1590 = vshrl.u32 %v1570, 16
        %v1592 = vshll.u32 %v1570, 16
        %v1594 = vrot.slane %v1592, 1
        %v1595 = vor.u32 %v1590, %v1594
        %v1597 = vshll.u32 %v1571, 16
        %v1599 = vrot.slane %v1597, 1
        %v1600 = vsel %vm375, %v1595, %v1599
        %v1618 = vunpack.c.l.b16 %v1573
        %v1619 = vunpack.c.l.b16 %v1574
        %v1620 = vunpack.c.l.b16 %v1575
        %v1621 = vunpack.c.l.b16 %v1576
        %v1622 = vunpack.c.l.b16 %v1577
        %v1623 = vunpack.c.l.b16 %v1578
        %v1624 = vunpack.c.l.b16 %v1579
        %v1625 = vunpack.c.l.b16 %v1580
        %v1626 = vunpack.c.l.b16 %v1581
        %v1627 = vunpack.c.l.b16 %v1582
        %v1628 = vunpack.c.l.b16 %v1583
        %v1629 = vunpack.c.l.b16 %v1584
        %v1630 = vunpack.c.l.b16 %v1585
        %v1631 = vunpack.c.l.b16 %v1586
        %v1632 = vunpack.c.l.b16 %v1587
        %v1633 = vunpack.c.l.b16 %v1588
        %v1634 = vpack.c.b16 %v1619, %v1618
        %v1635 = vpack.c.b16 %v1621, %v1620
        %v1636 = vpack.c.b16 %v1623, %v1622
        %v1637 = vpack.c.b16 %v1625, %v1624
        %v1638 = vpack.c.b16 %v1627, %v1626
        %v1639 = vpack.c.b16 %v1629, %v1628
        %v1640 = vpack.c.b16 %v1631, %v1630
        %v1641 = vpack.c.b16 %v1633, %v1632
        %1650 = vmatprep.subr.bf16.mxu0 0
        %1651 = vmatpush1.bf16.msra.mxu0 %v1634
        %1652 = vmatprep.subr.bf16.mxu0 0
        %1653 = vmatpush1.bf16.msra.mxu0 %v1635
        %1654 = vmatprep.subr.bf16.mxu0 0
        %1655 = vmatpush1.bf16.msra.mxu0 %v1636
        %1656 = vmatprep.subr.bf16.mxu0 0
        %1657 = vmatpush1.bf16.msra.mxu0 %v1637
        %1658 = vmatprep.subr.bf16.mxu0 0
        %1659 = vmatpush1.bf16.msra.mxu0 %v1638
        %1660 = vmatprep.subr.bf16.mxu0 0
        %1661 = vmatpush1.bf16.msra.mxu0 %v1639
        %1662 = vmatprep.subr.bf16.mxu0 0
        %1663 = vmatpush1.bf16.msra.mxu0 %v1640
        %1664 = vmatprep.subr.bf16.mxu0 0
        %1665 = vmatpush1.bf16.msra.mxu0 %v1641
        %1666 = vmatprep.subr.bf16.mxu0 0
        %1667 = vmatpush1.bf16.msra.mxu0 0
        %1668 = vmatprep.subr.bf16.mxu0 0
        %1669 = vmatpush1.bf16.msra.mxu0 0
        %1670 = vmatprep.subr.bf16.mxu0 0
        %1671 = vmatpush1.bf16.msra.mxu0 0
        %1672 = vmatprep.subr.bf16.mxu0 0
        %1673 = vmatpush1.bf16.msra.mxu0 0
        %1674 = vmatprep.subr.bf16.mxu0 0
        %1675 = vmatpush1.bf16.msra.mxu0 0
        %1676 = vmatprep.subr.bf16.mxu0 0
        %1677 = vmatpush1.bf16.msra.mxu0 0
        %1678 = vmatprep.subr.bf16.mxu0 0
        %1679 = vmatpush1.bf16.msra.mxu0 0
        %1680 = vmatprep.subr.bf16.mxu0 0
        %1681 = vmatpush1.bf16.msra.mxu0 0
        %1682 = vmatprep.mubr.bf16.mxu0 0
        %1683 = vmatmul.mubr.bf16.gmra.mrb[0].mxu0 %v1600
        %v1684 = vpop.f32.mrb[0].mxu0
        %v1685 = vadd.f32 0.0, %v1684
        %v1686 = vpop.f32.mrb[0].mxu0
        %v1687 = vpop.f32.mrb[0].mxu0
        %v1688 = vadd.f32 0.0, %v1687
        %v1689 = vpop.f32.mrb[0].mxu0
        %1690 = vdwg.mxu0
        %v1707 = vunpack.c.l.b16 %v1554
        %v1708 = vunpack.c.l.b16 %v1555
        %v1709 = vunpack.c.l.b16 %v1556
        %v1710 = vunpack.c.l.b16 %v1557
        %v1711 = vunpack.c.l.b16 %v1558
        %v1712 = vunpack.c.l.b16 %v1559
        %v1713 = vunpack.c.l.b16 %v1560
        %v1714 = vunpack.c.l.b16 %v1561
        %v1715 = vunpack.c.l.b16 %v1562
        %v1716 = vunpack.c.l.b16 %v1563
        %v1717 = vunpack.c.l.b16 %v1564
        %v1718 = vunpack.c.l.b16 %v1565
        %v1719 = vunpack.c.l.b16 %v1566
        %v1720 = vunpack.c.l.b16 %v1567
        %v1721 = vunpack.c.l.b16 %v1568
        %v1722 = vunpack.c.l.b16 %v1569
        %v1723 = vpack.c.b16 %v1708, %v1707
        %v1724 = vpack.c.b16 %v1710, %v1709
        %v1725 = vpack.c.b16 %v1712, %v1711
        %v1726 = vpack.c.b16 %v1714, %v1713
        %v1727 = vpack.c.b16 %v1716, %v1715
        %v1728 = vpack.c.b16 %v1718, %v1717
        %v1729 = vpack.c.b16 %v1720, %v1719
        %v1730 = vpack.c.b16 %v1722, %v1721
        %1739 = vmatprep.subr.bf16.mxu0 0
        %1740 = vmatpush1.bf16.msra.mxu0 %v1723
        %1741 = vmatprep.subr.bf16.mxu0 0
        %1742 = vmatpush1.bf16.msra.mxu0 %v1724
        %1743 = vmatprep.subr.bf16.mxu0 0
        %1744 = vmatpush1.bf16.msra.mxu0 %v1725
        %1745 = vmatprep.subr.bf16.mxu0 0
        %1746 = vmatpush1.bf16.msra.mxu0 %v1726
        %1747 = vmatprep.subr.bf16.mxu0 0
        %1748 = vmatpush1.bf16.msra.mxu0 %v1727
        %1749 = vmatprep.subr.bf16.mxu0 0
        %1750 = vmatpush1.bf16.msra.mxu0 %v1728
        %1751 = vmatprep.subr.bf16.mxu0 0
        %1752 = vmatpush1.bf16.msra.mxu0 %v1729
        %1753 = vmatprep.subr.bf16.mxu0 0
        %1754 = vmatpush1.bf16.msra.mxu0 %v1730
        %1755 = vmatprep.subr.bf16.mxu0 0
        %1756 = vmatpush1.bf16.msra.mxu0 0
        %1757 = vmatprep.subr.bf16.mxu0 0
        %1758 = vmatpush1.bf16.msra.mxu0 0
        %1759 = vmatprep.subr.bf16.mxu0 0
        %1760 = vmatpush1.bf16.msra.mxu0 0
        %1761 = vmatprep.subr.bf16.mxu0 0
        %1762 = vmatpush1.bf16.msra.mxu0 0
        %1763 = vmatprep.subr.bf16.mxu0 0
        %1764 = vmatpush1.bf16.msra.mxu0 0
        %1765 = vmatprep.subr.bf16.mxu0 0
        %1766 = vmatpush1.bf16.msra.mxu0 0
        %1767 = vmatprep.subr.bf16.mxu0 0
        %1768 = vmatpush1.bf16.msra.mxu0 0
        %1769 = vmatprep.subr.bf16.mxu0 0
        %1770 = vmatpush1.bf16.msra.mxu0 0
        %1771 = vmatprep.mubr.bf16.mxu0 0
        %1772 = vmatmul.mubr.bf16.gmra.mrb[0].mxu0 %v1553
        %v1773 = vpop.f32.mrb[0].mxu0
        %v1774 = vadd.f32 %v1685, %v1773
        %v1775 = vpop.f32.mrb[0].mxu0
        %v1776 = vpop.f32.mrb[0].mxu0
        %v1777 = vadd.f32 %v1688, %v1776
        %v1778 = vpop.f32.mrb[0].mxu0
        %1779 = vdwg.mxu0
        %v1780 = vld [vmem:[#allocation2] sm:$0xfe]
        %s1781 = scalar_lea.vmem [#allocation8], 128
        %v1782 = vld [vmem:[%s1781] sm:$0xf]
        %v1783 = vld [vmem:[%s1781 + $0x4] sm:$0xf]
        %v1784 = vld [vmem:[%s1781 + $0x8] sm:$0xf]
        %v1785 = vld [vmem:[%s1781 + $0xc] sm:$0xf]
        %v1786 = vld [vmem:[%s1781 + $0x10] sm:$0xf]
        %v1787 = vld [vmem:[%s1781 + $0x14] sm:$0xf]
        %v1788 = vld [vmem:[%s1781 + $0x18] sm:$0xf]
        %v1789 = vld [vmem:[%s1781 + $0x1c] sm:$0xf]
        %v1790 = vld [vmem:[%s1781 + $0x20] sm:$0xf]
        %v1791 = vld [vmem:[%s1781 + $0x24] sm:$0xf]
        %v1792 = vld [vmem:[%s1781 + $0x28] sm:$0xf]
        %v1793 = vld [vmem:[%s1781 + $0x2c] sm:$0xf]
        %v1794 = vld [vmem:[%s1781 + $0x30] sm:$0xf]
        %v1795 = vld [vmem:[%s1781 + $0x34] sm:$0xf]
        %v1796 = vld [vmem:[%s1781 + $0x38] sm:$0xf]
        %v1797 = vld [vmem:[%s1781 + $0x3c] sm:$0xf]
        %v1800 = vrot.slane %v1780, 1
        %v1801 = vrot.slane %v1571, 1
        %v1802 = vsel %vm587, %v1800, %v1801
        %v1820 = vunpack.c.l.b16 %v1782
        %v1821 = vunpack.c.l.b16 %v1783
        %v1822 = vunpack.c.l.b16 %v1784
        %v1823 = vunpack.c.l.b16 %v1785
        %v1824 = vunpack.c.l.b16 %v1786
        %v1825 = vunpack.c.l.b16 %v1787
        %v1826 = vunpack.c.l.b16 %v1788
        %v1827 = vunpack.c.l.b16 %v1789
        %v1828 = vunpack.c.l.b16 %v1790
        %v1829 = vunpack.c.l.b16 %v1791
        %v1830 = vunpack.c.l.b16 %v1792
        %v1831 = vunpack.c.l.b16 %v1793
        %v1832 = vunpack.c.l.b16 %v1794
        %v1833 = vunpack.c.l.b16 %v1795
        %v1834 = vunpack.c.l.b16 %v1796
        %v1835 = vunpack.c.l.b16 %v1797
        %v1836 = vpack.c.b16 %v1821, %v1820
        %v1837 = vpack.c.b16 %v1823, %v1822
        %v1838 = vpack.c.b16 %v1825, %v1824
        %v1839 = vpack.c.b16 %v1827, %v1826
        %v1840 = vpack.c.b16 %v1829, %v1828
        %v1841 = vpack.c.b16 %v1831, %v1830
        %v1842 = vpack.c.b16 %v1833, %v1832
        %v1843 = vpack.c.b16 %v1835, %v1834
        %1852 = vmatprep.subr.bf16.mxu0 0
        %1853 = vmatpush1.bf16.msra.mxu0 %v1836
        %1854 = vmatprep.subr.bf16.mxu0 0
        %1855 = vmatpush1.bf16.msra.mxu0 %v1837
        %1856 = vmatprep.subr.bf16.mxu0 0
        %1857 = vmatpush1.bf16.msra.mxu0 %v1838
        %1858 = vmatprep.subr.bf16.mxu0 0
        %1859 = vmatpush1.bf16.msra.mxu0 %v1839
        %1860 = vmatprep.subr.bf16.mxu0 0
        %1861 = vmatpush1.bf16.msra.mxu0 %v1840
        %1862 = vmatprep.subr.bf16.mxu0 0
        %1863 = vmatpush1.bf16.msra.mxu0 %v1841
        %1864 = vmatprep.subr.bf16.mxu0 0
        %1865 = vmatpush1.bf16.msra.mxu0 %v1842
        %1866 = vmatprep.subr.bf16.mxu0 0
        %1867 = vmatpush1.bf16.msra.mxu0 %v1843
        %1868 = vmatprep.subr.bf16.mxu0 0
        %1869 = vmatpush1.bf16.msra.mxu0 0
        %1870 = vmatprep.subr.bf16.mxu0 0
        %1871 = vmatpush1.bf16.msra.mxu0 0
        %1872 = vmatprep.subr.bf16.mxu0 0
        %1873 = vmatpush1.bf16.msra.mxu0 0
        %1874 = vmatprep.subr.bf16.mxu0 0
        %1875 = vmatpush1.bf16.msra.mxu0 0
        %1876 = vmatprep.subr.bf16.mxu0 0
        %1877 = vmatpush1.bf16.msra.mxu0 0
        %1878 = vmatprep.subr.bf16.mxu0 0
        %1879 = vmatpush1.bf16.msra.mxu0 0
        %1880 = vmatprep.subr.bf16.mxu0 0
        %1881 = vmatpush1.bf16.msra.mxu0 0
        %1882 = vmatprep.subr.bf16.mxu0 0
        %1883 = vmatpush1.bf16.msra.mxu0 0
        %1884 = vmatprep.mubr.bf16.mxu0 0
        %1885 = vmatmul.mubr.bf16.gmra.mrb[0].mxu0 %v1802
        %v1886 = vpop.f32.mrb[0].mxu0
        %v1887 = vadd.f32 0.0, %v1886
        %v1888 = vpop.f32.mrb[0].mxu0
        %v1889 = vpop.f32.mrb[0].mxu0
        %v1890 = vadd.f32 0.0, %v1889
        %v1891 = vpop.f32.mrb[0].mxu0
        %1892 = vdwg.mxu0
        %v1893 = vadd.f32 %v1774, %v1887
        %v1894 = vadd.f32 %v1777, %v1890
        %v1895 = vld [vmem:[#allocation2 + $0x8] sm:$0x3]
        %s1896 = scalar_lea.vmem [#allocation8], 192
        %v1897 = vld [vmem:[%s1896] sm:$0xf]
        %v1898 = vld [vmem:[%s1896 + $0x4] sm:$0xf]
        %v1899 = vld [vmem:[%s1896 + $0x8] sm:$0xf]
        %v1900 = vld [vmem:[%s1896 + $0xc] sm:$0xf]
        %v1901 = vld [vmem:[%s1896 + $0x10] sm:$0xf]
        %v1902 = vld [vmem:[%s1896 + $0x14] sm:$0xf]
        %v1903 = vld [vmem:[%s1896 + $0x18] sm:$0xf]
        %v1904 = vld [vmem:[%s1896 + $0x1c] sm:$0xf]
        %v1905 = vld [vmem:[%s1896 + $0x20] sm:$0xf]
        %v1906 = vld [vmem:[%s1896 + $0x24] sm:$0xf]
        %v1907 = vld [vmem:[%s1896 + $0x28] sm:$0xf]
        %v1908 = vld [vmem:[%s1896 + $0x2c] sm:$0xf]
        %v1909 = vld [vmem:[%s1896 + $0x30] sm:$0xf]
        %v1910 = vld [vmem:[%s1896 + $0x34] sm:$0xf]
        %v1911 = vld [vmem:[%s1896 + $0x38] sm:$0xf]
        %v1912 = vld [vmem:[%s1896 + $0x3c] sm:$0xf]
        %v1914 = vshrl.u32 %v1780, 16
        %v1916 = vrot.slane %v1914, 1
        %v1917 = vshll.u32 %v1780, 16
        %v1919 = vrot.slane %v1917, 2
        %v1920 = vor.u32 %v1916, %v1919
        %v1922 = vshrl.u32 %v1895, 16
        %v1924 = vrot.slane %v1922, 1
        %v1925 = vshll.u32 %v1895, 16
        %v1927 = vrot.slane %v1925, 2
        %v1928 = vor.u32 %v1924, %v1927
        %v1929 = vsel %vm701, %v1920, %v1928
        %v1947 = vunpack.c.l.b16 %v1897
        %v1948 = vunpack.c.l.b16 %v1898
        %v1949 = vunpack.c.l.b16 %v1899
        %v1950 = vunpack.c.l.b16 %v1900
        %v1951 = vunpack.c.l.b16 %v1901
        %v1952 = vunpack.c.l.b16 %v1902
        %v1953 = vunpack.c.l.b16 %v1903
        %v1954 = vunpack.c.l.b16 %v1904
        %v1955 = vunpack.c.l.b16 %v1905
        %v1956 = vunpack.c.l.b16 %v1906
        %v1957 = vunpack.c.l.b16 %v1907
        %v1958 = vunpack.c.l.b16 %v1908
        %v1959 = vunpack.c.l.b16 %v1909
        %v1960 = vunpack.c.l.b16 %v1910
        %v1961 = vunpack.c.l.b16 %v1911
        %v1962 = vunpack.c.l.b16 %v1912
        %v1963 = vpack.c.b16 %v1948, %v1947
        %v1964 = vpack.c.b16 %v1950, %v1949
        %v1965 = vpack.c.b16 %v1952, %v1951
        %v1966 = vpack.c.b16 %v1954, %v1953
        %v1967 = vpack.c.b16 %v1956, %v1955
        %v1968 = vpack.c.b16 %v1958, %v1957
        %v1969 = vpack.c.b16 %v1960, %v1959
        %v1970 = vpack.c.b16 %v1962, %v1961
        %1979 = vmatprep.subr.bf16.mxu0 0
        %1980 = vmatpush1.bf16.msra.mxu0 %v1963
        %1981 = vmatprep.subr.bf16.mxu0 0
        %1982 = vmatpush1.bf16.msra.mxu0 %v1964
        %1983 = vmatprep.subr.bf16.mxu0 0
        %1984 = vmatpush1.bf16.msra.mxu0 %v1965
        %1985 = vmatprep.subr.bf16.mxu0 0
        %1986 = vmatpush1.bf16.msra.mxu0 %v1966
        %1987 = vmatprep.subr.bf16.mxu0 0
        %1988 = vmatpush1.bf16.msra.mxu0 %v1967
        %1989 = vmatprep.subr.bf16.mxu0 0
        %1990 = vmatpush1.bf16.msra.mxu0 %v1968
        %1991 = vmatprep.subr.bf16.mxu0 0
        %1992 = vmatpush1.bf16.msra.mxu0 %v1969
        %1993 = vmatprep.subr.bf16.mxu0 0
        %1994 = vmatpush1.bf16.msra.mxu0 %v1970
        %1995 = vmatprep.subr.bf16.mxu0 0
        %1996 = vmatpush1.bf16.msra.mxu0 0
        %1997 = vmatprep.subr.bf16.mxu0 0
        %1998 = vmatpush1.bf16.msra.mxu0 0
        %1999 = vmatprep.subr.bf16.mxu0 0
        %2000 = vmatpush1.bf16.msra.mxu0 0
        %2001 = vmatprep.subr.bf16.mxu0 0
        %2002 = vmatpush1.bf16.msra.mxu0 0
        %2003 = vmatprep.subr.bf16.mxu0 0
        %2004 = vmatpush1.bf16.msra.mxu0 0
        %2005 = vmatprep.subr.bf16.mxu0 0
        %2006 = vmatpush1.bf16.msra.mxu0 0
        %2007 = vmatprep.subr.bf16.mxu0 0
        %2008 = vmatpush1.bf16.msra.mxu0 0
        %2009 = vmatprep.subr.bf16.mxu0 0
        %2010 = vmatpush1.bf16.msra.mxu0 0
        %2011 = vmatprep.mubr.bf16.mxu0 0
        %2012 = vmatmul.mubr.bf16.gmra.mrb[0].mxu0 %v1929
        %v2013 = vpop.f32.mrb[0].mxu0
        %v2014 = vadd.f32 0.0, %v2013
        %v2015 = vpop.f32.mrb[0].mxu0
        %v2016 = vpop.f32.mrb[0].mxu0
        %v2017 = vadd.f32 0.0, %v2016
        %v2018 = vpop.f32.mrb[0].mxu0
        %2019 = vdwg.mxu0
        %v2020 = vadd.f32 %v1893, %v2014
        %v2021 = vadd.f32 %v1894, %v2017
        %v2022 = vld [vmem:[#allocation2] sm:$0xfc]
        %s2023 = scalar_lea.vmem [#allocation8], 256
        %v2024 = vld [vmem:[%s2023] sm:$0xf]
        %v2025 = vld [vmem:[%s2023 + $0x4] sm:$0xf]
        %v2026 = vld [vmem:[%s2023 + $0x8] sm:$0xf]
        %v2027 = vld [vmem:[%s2023 + $0xc] sm:$0xf]
        %v2028 = vld [vmem:[%s2023 + $0x10] sm:$0xf]
        %v2029 = vld [vmem:[%s2023 + $0x14] sm:$0xf]
        %v2030 = vld [vmem:[%s2023 + $0x18] sm:$0xf]
        %v2031 = vld [vmem:[%s2023 + $0x1c] sm:$0xf]
        %v2032 = vld [vmem:[%s2023 + $0x20] sm:$0xf]
        %v2033 = vld [vmem:[%s2023 + $0x24] sm:$0xf]
        %v2034 = vld [vmem:[%s2023 + $0x28] sm:$0xf]
        %v2035 = vld [vmem:[%s2023 + $0x2c] sm:$0xf]
        %v2036 = vld [vmem:[%s2023 + $0x30] sm:$0xf]
        %v2037 = vld [vmem:[%s2023 + $0x34] sm:$0xf]
        %v2038 = vld [vmem:[%s2023 + $0x38] sm:$0xf]
        %v2039 = vld [vmem:[%s2023 + $0x3c] sm:$0xf]
        %v2042 = vrot.slane %v2022, 2
        %v2043 = vrot.slane %v1895, 2
        %v2044 = vsel %vm831, %v2042, %v2043
        %v2062 = vunpack.c.l.b16 %v2024
        %v2063 = vunpack.c.l.b16 %v2025
        %v2064 = vunpack.c.l.b16 %v2026
        %v2065 = vunpack.c.l.b16 %v2027
        %v2066 = vunpack.c.l.b16 %v2028
        %v2067 = vunpack.c.l.b16 %v2029
        %v2068 = vunpack.c.l.b16 %v2030
        %v2069 = vunpack.c.l.b16 %v2031
        %v2070 = vunpack.c.l.b16 %v2032
        %v2071 = vunpack.c.l.b16 %v2033
        %v2072 = vunpack.c.l.b16 %v2034
        %v2073 = vunpack.c.l.b16 %v2035
        %v2074 = vunpack.c.l.b16 %v2036
        %v2075 = vunpack.c.l.b16 %v2037
        %v2076 = vunpack.c.l.b16 %v2038
        %v2077 = vunpack.c.l.b16 %v2039
        %v2078 = vpack.c.b16 %v2063, %v2062
        %v2079 = vpack.c.b16 %v2065, %v2064
        %v2080 = vpack.c.b16 %v2067, %v2066
        %v2081 = vpack.c.b16 %v2069, %v2068
        %v2082 = vpack.c.b16 %v2071, %v2070
        %v2083 = vpack.c.b16 %v2073, %v2072
        %v2084 = vpack.c.b16 %v2075, %v2074
        %v2085 = vpack.c.b16 %v2077, %v2076
        %2094 = vmatprep.subr.bf16.mxu0 0
        %2095 = vmatpush1.bf16.msra.mxu0 %v2078
        %2096 = vmatprep.subr.bf16.mxu0 0
        %2097 = vmatpush1.bf16.msra.mxu0 %v2079
        %2098 = vmatprep.subr.bf16.mxu0 0
        %2099 = vmatpush1.bf16.msra.mxu0 %v2080
        %2100 = vmatprep.subr.bf16.mxu0 0
        %2101 = vmatpush1.bf16.msra.mxu0 %v2081
        %2102 = vmatprep.subr.bf16.mxu0 0
        %2103 = vmatpush1.bf16.msra.mxu0 %v2082
        %2104 = vmatprep.subr.bf16.mxu0 0
        %2105 = vmatpush1.bf16.msra.mxu0 %v2083
        %2106 = vmatprep.subr.bf16.mxu0 0
        %2107 = vmatpush1.bf16.msra.mxu0 %v2084
        %2108 = vmatprep.subr.bf16.mxu0 0
        %2109 = vmatpush1.bf16.msra.mxu0 %v2085
        %2110 = vmatprep.subr.bf16.mxu0 0
        %2111 = vmatpush1.bf16.msra.mxu0 0
        %2112 = vmatprep.subr.bf16.mxu0 0
        %2113 = vmatpush1.bf16.msra.mxu0 0
        %2114 = vmatprep.subr.bf16.mxu0 0
        %2115 = vmatpush1.bf16.msra.mxu0 0
        %2116 = vmatprep.subr.bf16.mxu0 0
        %2117 = vmatpush1.bf16.msra.mxu0 0
        %2118 = vmatprep.subr.bf16.mxu0 0
        %2119 = vmatpush1.bf16.msra.mxu0 0
        %2120 = vmatprep.subr.bf16.mxu0 0
        %2121 = vmatpush1.bf16.msra.mxu0 0
        %2122 = vmatprep.subr.bf16.mxu0 0
        %2123 = vmatpush1.bf16.msra.mxu0 0
        %2124 = vmatprep.subr.bf16.mxu0 0
        %2125 = vmatpush1.bf16.msra.mxu0 0
        %2126 = vmatprep.mubr.bf16.mxu0 0
        %2127 = vmatmul.mubr.bf16.gmra.mrb[0].mxu0 %v2044
        %v2128 = vpop.f32.mrb[0].mxu0
        %v2129 = vadd.f32 0.0, %v2128
        %v2130 = vpop.f32.mrb[0].mxu0
        %v2131 = vpop.f32.mrb[0].mxu0
        %v2132 = vadd.f32 0.0, %v2131
        %v2133 = vpop.f32.mrb[0].mxu0
        %2134 = vdwg.mxu0
        %v2135 = vadd.f32 %v2020, %v2129
        %v2136 = vadd.f32 %v2021, %v2132
        %v2137 = vld [vmem:[%s6] sm:$0x1]
        %v2138 = vlaneseq
        %v2139 = vshrl.u32 %v2138, 7
        %v2140 = vsub.s32 0, %v2139
        %v2141 = vrot.slane %v2137, %v2140
        %v2142 = vmul.f32 %v2135, %v2141
        %v2143 = vmul.f32 %v2136, %v2141
        %v2144 = vld [vmem:[%s6 + $0x1] sm:$0x1]
        %v2145 = vlaneseq
        %v2146 = vshrl.u32 %v2145, 7
        %v2147 = vsub.s32 0, %v2146
        %v2148 = vrot.slane %v2144, %v2147
        %v2149 = vadd.f32 %v2142, %v2148
        %v2150 = vadd.f32 %v2143, %v2148
        %2151 = vst [vmem:[%s322] sm:$0xff] %v2149
        %2152 = vst [vmem:[%s322 + $0x8] sm:$0xff] %v2150
        %p2153 = scmp.lt.s32.totalorder %s20, 1
        %s2154 = scalar_select %p2153, %s20, 1
        %s2155 = smul.addr %s2154, 2
        %s2156 = smul.addr %s2155, 8
        %s2157 = scalar_lea.vmem %s7, %s2156
        // Predicated region
        $region61: #{postnet_pallas.1} parent=47 // pred_check
          %p2158 = pneg %p190
        $region62: #{postnet_pallas.1} parent=47 // pred_check_branch
          %2160 = sbr.rel (%p2158) target = $region64
        $region63: #{postnet_pallas.1} parent=47 // pred_region
          _
        $region64: #{postnet_pallas.1} parent=47 // pred_fallthru
          _
      $region48: #{postnet_pallas.1} parent=5 // pred_fallthru
        _
      %p2161 = scmp.le.s32.totalorder 2, %s15
      // Predicated region
      $region65: #{postnet_pallas.1} parent=5 // pred_check
        %p2162 = pneg %p2161
      $region66: #{postnet_pallas.1} parent=5 // pred_check_branch
        %2164 = sbr.rel (%p2162) target = $region68
      $region67: #{postnet_pallas.1} parent=5 // pred_region
        %s2165 = ssub.s32 %s15, 2
        // Predicated region
        $region69: #{postnet_pallas.1} parent=67 // pred_check
          %p2166 = pneg %p196
        $region70: #{postnet_pallas.1} parent=67 // pred_check_branch
          %2168 = sbr.rel (%p2166) target = $region72
        $region71: #{postnet_pallas.1} parent=67 // pred_region
          %p2169 = scmp.lt.s32.totalorder %s21, 1
          %s2170 = scalar_select %p2169, %s21, 1
          %s2171 = smul.addr %s2170, 2
          %s2172 = smul.addr %s2171, 8
          %s2173 = scalar_lea.vmem %s7, %s2172
        $region72: #{postnet_pallas.1} parent=67 // pred_fallthru
          _
      $region68: #{postnet_pallas.1} parent=5 // pred_fallthru
        _
    $region6: #{postnet_pallas.1} parent=1 // loop_footer
      %s19 = sadd.s32 1, %s15
    $region7: #{postnet_pallas.1} parent=1 // loop_footer_branch
      %14 = sbr.rel target = $region3
    $region8: #{postnet_pallas.1} parent=1 // loop_exit
      _
    %2174 = vsyncpa [#allocation5], 1
    %s2175 = scalar_lea.sflag [#allocation5], 1
    %2176 = vsyncpa %s2175, 1
    %2177 = vsyncpa [#allocation7], 1

</llo_original>
